<compile_context>
chip_gen: v6e
topology: v6e:2x2x1
jax: 0.10.0
libtpu: 0.0.40
codegen_flags: <defaults>
</compile_context>

<pallas_src>
import functools

import jax
import jax.numpy as jnp
from jax import lax
from jax.experimental import pallas as pl
from jax.experimental.pallas import tpu as pltpu


def _layernorm(x, gamma, beta, eps=1e-5):
    mu = jnp.mean(x, axis=-1, keepdims=True)
    var = jnp.mean(jnp.square(x - mu), axis=-1, keepdims=True)
    return (x - mu) * lax.rsqrt(var + eps) * gamma + beta


def _gelu_tanh(x):
    c = 0.7978845608028654  # sqrt(2/pi)
    return 0.5 * x * (1.0 + jnp.tanh(c * (x + 0.044715 * x * x * x)))


def transformer_block_kernel(x_ref, *rest, num_heads: int, use_prompt: bool):
    if use_prompt:
        prompt_ref, rest = rest[0], rest[1:]
    else:
        prompt_ref = None
    (ln1g_ref, ln1b_ref, wqkv_ref, bqkv_ref, wo_ref, bo_ref,
     ln2g_ref, ln2b_ref, w1_ref, b1_ref, w2_ref, b2_ref,
     o_ref, ctx_scratch) = rest

    x = x_ref[...].astype(jnp.float32)                    # [S, H]
    if use_prompt:
        # Prompts are zero-padded to the full sequence length on the host, so a
        # plain add reproduces "add to the first pre_seq_len tokens".
        x = x + prompt_ref[...].astype(jnp.float32)

    S, H = x.shape
    dh = H // num_heads
    scale = 1.0 / (dh ** 0.5)

    # Causal mask: built once per block invocation (hoisted out of any head work).
    row = lax.broadcasted_iota(jnp.int32, (S, S), 0)
    col = lax.broadcasted_iota(jnp.int32, (S, S), 1)
    causal = row >= col                                    # [S, S] bool

    # ---------------- self-attention ----------------
    h = _layernorm(x, ln1g_ref[...], ln1b_ref[...])        # f32 stats
    # One full-width QKV matmul (bf16 into the MXU, f32 accumulate).
    qkv = jnp.dot(h.astype(jnp.bfloat16), wqkv_ref[...],
                  preferred_element_type=jnp.float32) + bqkv_ref[...]   # [S, 3H] f32
    q = qkv[:, 0:H] * scale          # fold 1/sqrt(dh) into Q, not into the SxS scores
    k = qkv[:, H:2 * H]
    v = qkv[:, 2 * H:3 * H]

    # Heads -> leading batch dim (layout plumbing only); scores and PV for ALL heads
    # are each a single batched dot_general.
    def to_heads(t):
        return jnp.stack(
            [t[:, i * dh:(i + 1) * dh] for i in range(num_heads)], axis=0
        ).astype(jnp.bfloat16)                             # [nh, S, dh]

    q3, k3, v3 = to_heads(q), to_heads(k), to_heads(v)

    s = jnp.einsum("nqd,nkd->nqk", q3, k3,
                   preferred_element_type=jnp.float32)     # [nh, S, S] f32
    s = jnp.where(causal[None, :, :], s, -1e30)            # f32 mask constant is safe
    m = jnp.max(s, axis=-1, keepdims=True)
    p_un = jnp.exp(s - m)
    denom = jnp.sum(p_un, axis=-1, keepdims=True)
    p = p_un * pl.reciprocal(denom, approx=True)           # EUP reciprocal, not VALU div
    ctx = jnp.einsum("nqk,nkd->nqd", p.astype(jnp.bfloat16), v3,
                     preferred_element_type=jnp.float32)   # [nh, S, dh] f32

    # Assemble [S, H] context in VMEM scratch, then ONE full-width Wo projection.
    for i in range(num_heads):
        ctx_scratch[:, i * dh:(i + 1) * dh] = ctx[i]
    attn = jnp.dot(ctx_scratch[...].astype(jnp.bfloat16), wo_ref[...],
                   preferred_element_type=jnp.float32) + bo_ref[...]    # [S, H]
    x = x + attn

    # ---------------- MLP ----------------
    h2 = _layernorm(x, ln2g_ref[...], ln2b_ref[...])
    ff = jnp.dot(h2.astype(jnp.bfloat16), w1_ref[...],
                 preferred_element_type=jnp.float32) + b1_ref[...]
    ff = _gelu_tanh(ff)
    ff = jnp.dot(ff.astype(jnp.bfloat16), w2_ref[...],
                 preferred_element_type=jnp.float32) + b2_ref[...]

    o_ref[...] = (x + ff).astype(o_ref.dtype)


def run_block(x, p, prompt=None, *, num_heads):
    """Apply one transformer block; grid parallel over batch."""
    B, S, H = x.shape
    F = p["w1"].shape[1]
    use_prompt = prompt is not None

    def const_spec(shape):
        return pl.BlockSpec(shape, lambda b: (0, 0))

    act_spec = pl.BlockSpec((pl.Squeezed(), S, H), lambda b: (b, 0, 0))

    in_specs = [act_spec]
    args = [x]
    if use_prompt:
        in_specs.append(pl.BlockSpec((pl.Squeezed(), S, H), lambda b: (b, 0, 0)))
        args.append(prompt)
    in_specs += [
        const_spec((1, H)), const_spec((1, H)),              # ln1 gamma/beta
        const_spec((H, 3 * H)), const_spec((1, 3 * H)),      # Wqkv (bf16), bqkv
        const_spec((H, H)), const_spec((1, H)),              # Wo (bf16), bo
        const_spec((1, H)), const_spec((1, H)),              # ln2 gamma/beta
        const_spec((H, F)), const_spec((1, F)),              # W1 (bf16), b1
        const_spec((F, H)), const_spec((1, H)),              # W2 (bf16), b2
    ]
    args += [p["ln1_g"], p["ln1_b"], p["wqkv"], p["bqkv"], p["wo"], p["bo"],
             p["ln2_g"], p["ln2_b"], p["w1"], p["b1"], p["w2"], p["b2"]]

    kernel = functools.partial(transformer_block_kernel,
                               num_heads=num_heads, use_prompt=use_prompt)
    return pl.pallas_call(
        kernel,
        out_shape=jax.ShapeDtypeStruct((B, S, H), x.dtype),
        grid=(B,),
        in_specs=in_specs,
        out_specs=pl.BlockSpec((pl.Squeezed(), S, H), lambda b: (b, 0, 0)),
        scratch_shapes=[pltpu.VMEM((S, H), jnp.float32)],    # per-block context buffer
        compiler_params=pltpu.CompilerParams(
            dimension_semantics=("parallel",)),
    )(*args)


def remote_sequential_forward(inputs, layer_params, prompts=None, *, num_heads):
    """Equivalent of RemoteSequential.forward (stateless path).

    inputs:  [batch, seq, hidden]
    prompts: optional [num_blocks, batch, pre_seq_len, hidden] — added to the first
             pre_seq_len positions before each block (Petals deep-prompt semantics).
    """
    assert inputs.ndim == 3, "inputs must be [batch_size, seq_length, hidden_size]"
    x = inputs
    if prompts is not None:
        # Zero-pad once (outside the per-block loop) so the per-block prompt add can
        # be fused into the kernel instead of a per-block HBM read-modify-write of x.
        pre = prompts.shape[2]
        S = x.shape[1]
        prompts = jnp.pad(
            prompts, ((0, 0), (0, 0), (0, S - pre), (0, 0))).astype(x.dtype)
    for i, p in enumerate(layer_params):
        pr = None if prompts is None else prompts[i]
        x = run_block(x, p, pr, num_heads=num_heads)
    # TODO(synk): session-based incremental inference (InferenceSession.step /
    # KV-cache) has no local equivalent here; only the stateless forward is implemented.
    return x


def init_layer_params(key, hidden, ffn):
    ks = jax.random.split(key, 4)
    std = 0.02
    wdt = jnp.bfloat16  # bf16 weights: MXU-native on v6e/v7x, halves weight DMA bytes
    return {
        "ln1_g": jnp.ones((1, hidden), jnp.float32),
        "ln1_b": jnp.zeros((1, hidden), jnp.float32),
        "wqkv": (std * jax.random.normal(ks[0], (hidden, 3 * hidden))).astype(wdt),
        "bqkv": jnp.zeros((1, 3 * hidden), jnp.float32),
        "wo": (std * jax.random.normal(ks[1], (hidden, hidden))).astype(wdt),
        "bo": jnp.zeros((1, hidden), jnp.float32),
        "ln2_g": jnp.ones((1, hidden), jnp.float32),
        "ln2_b": jnp.zeros((1, hidden), jnp.float32),
        "w1": (std * jax.random.normal(ks[2], (hidden, ffn))).astype(wdt),
        "b1": jnp.zeros((1, ffn), jnp.float32),
        "w2": (std * jax.random.normal(ks[3], (ffn, hidden))).astype(wdt),
        "b2": jnp.zeros((1, hidden), jnp.float32),
    }


if __name__ == "__main__":
    batch, seq, hidden = 2, 8, 32
    num_heads, ffn = 4, 128
    num_blocks = 2          # "start_block..end_block" range of remote blocks
    pre_seq_len = 4

    key = jax.random.PRNGKey(0)
    k_x, k_p, k_pr = jax.random.split(key, 3)
    inputs = jax.random.normal(k_x, (batch, seq, hidden), dtype=jnp.float32)

    layer_keys = jax.random.split(k_p, num_blocks)
    layer_params = [init_layer_params(k, hidden, ffn) for k in layer_keys]

    # Stateless forward (prompts=None), as in RemoteSequential.forward.
    out = remote_sequential_forward(inputs, layer_params, prompts=None,
                                    num_heads=num_heads)
    out = jax.block_until_ready(out)
    assert out.shape == (batch, seq, hidden)
    assert bool(jnp.all(jnp.isfinite(out)))

    # Deep-prompt path (prompts added to the first pre_seq_len tokens before each block).
    prompts = 0.01 * jax.random.normal(
        k_pr, (num_blocks, batch, pre_seq_len, hidden), dtype=jnp.float32)
    out_p = remote_sequential_forward(inputs, layer_params, prompts=prompts,
                                      num_heads=num_heads)
    out_p = jax.block_until_ready(out_p)
    assert out_p.shape == (batch, seq, hidden)
    assert bool(jnp.all(jnp.isfinite(out_p)))

    print("KERNEL_OK")
</pallas_src>

<mosaic_0001>
module attributes {stable_mosaic.version = 11 : i64} {
  func.func @transformer_block_kernel(%arg0: i32, %arg1: memref<1x8x32xf32, #tpu.memory_space<vmem>>, %arg2: memref<1x32xf32, #tpu.memory_space<vmem>>, %arg3: memref<1x32xf32, #tpu.memory_space<vmem>>, %arg4: memref<32x96xbf16, #tpu.memory_space<vmem>>, %arg5: memref<1x96xf32, #tpu.memory_space<vmem>>, %arg6: memref<32x32xbf16, #tpu.memory_space<vmem>>, %arg7: memref<1x32xf32, #tpu.memory_space<vmem>>, %arg8: memref<1x32xf32, #tpu.memory_space<vmem>>, %arg9: memref<1x32xf32, #tpu.memory_space<vmem>>, %arg10: memref<32x128xbf16, #tpu.memory_space<vmem>>, %arg11: memref<1x128xf32, #tpu.memory_space<vmem>>, %arg12: memref<128x32xbf16, #tpu.memory_space<vmem>>, %arg13: memref<1x32xf32, #tpu.memory_space<vmem>>, %arg14: memref<1x8x32xf32, #tpu.memory_space<vmem>>, %arg15: memref<8x32xf32, #tpu.memory_space<vmem>>) attributes {dimension_semantics = [#tpu.dimension_semantics<parallel>], iteration_bounds = array<i64: 2>, scalar_prefetch = 0 : i64, scratch_operands = 1 : i64, tpu.core_type = #tpu.core_type<tc>, window_params = [{transform_indices = @transform_0, window_bounds = array<i64: 1, 8, 32>}, {pipeline_mode = #tpu.pipeline_mode<synchronous>, transform_indices = @transform_1, window_bounds = array<i64: 1, 32>}, {pipeline_mode = #tpu.pipeline_mode<synchronous>, transform_indices = @transform_2, window_bounds = array<i64: 1, 32>}, {pipeline_mode = #tpu.pipeline_mode<synchronous>, transform_indices = @transform_3, window_bounds = array<i64: 32, 96>}, {pipeline_mode = #tpu.pipeline_mode<synchronous>, transform_indices = @transform_4, window_bounds = array<i64: 1, 96>}, {pipeline_mode = #tpu.pipeline_mode<synchronous>, transform_indices = @transform_5, window_bounds = array<i64: 32, 32>}, {pipeline_mode = #tpu.pipeline_mode<synchronous>, transform_indices = @transform_6, window_bounds = array<i64: 1, 32>}, {pipeline_mode = #tpu.pipeline_mode<synchronous>, transform_indices = @transform_7, window_bounds = array<i64: 1, 32>}, {pipeline_mode = #tpu.pipeline_mode<synchronous>, transform_indices = @transform_8, window_bounds = array<i64: 1, 32>}, {pipeline_mode = #tpu.pipeline_mode<synchronous>, transform_indices = @transform_9, window_bounds = array<i64: 32, 128>}, {pipeline_mode = #tpu.pipeline_mode<synchronous>, transform_indices = @transform_10, window_bounds = array<i64: 1, 128>}, {pipeline_mode = #tpu.pipeline_mode<synchronous>, transform_indices = @transform_11, window_bounds = array<i64: 128, 32>}, {pipeline_mode = #tpu.pipeline_mode<synchronous>, transform_indices = @transform_12, window_bounds = array<i64: 1, 32>}, {transform_indices = @transform_13, window_bounds = array<i64: 1, 8, 32>}]} {
    %c0 = arith.constant 0 : index
    %c0_0 = arith.constant 0 : index
    %c0_1 = arith.constant 0 : index
    %0 = vector.load %arg1[%c0, %c0_0, %c0_1] : memref<1x8x32xf32, #tpu.memory_space<vmem>>, vector<1x8x32xf32>
    %1 = vector.shape_cast %0 : vector<1x8x32xf32> to vector<8x32xf32>
    %2 = tpu.iota {dimensions = array<i32: 0>} : vector<8x8xi32>
    %3 = tpu.iota {dimensions = array<i32: 1>} : vector<8x8xi32>
    %4 = arith.cmpi sge, %2, %3 : vector<8x8xi32>
    %c0_2 = arith.constant 0 : index
    %c0_3 = arith.constant 0 : index
    %5 = vector.load %arg2[%c0_2, %c0_3] : memref<1x32xf32, #tpu.memory_space<vmem>>, vector<1x32xf32>
    %c0_4 = arith.constant 0 : index
    %c0_5 = arith.constant 0 : index
    %6 = vector.load %arg3[%c0_4, %c0_5] : memref<1x32xf32, #tpu.memory_space<vmem>>, vector<1x32xf32>
    %cst = arith.constant dense<0.000000e+00> : vector<8xf32>
    %7 = vector.multi_reduction <add>, %1, %cst [1] : vector<8x32xf32> to vector<8xf32>
    %8 = vector.shape_cast %7 : vector<8xf32> to vector<8x1xf32>
    %cst_6 = arith.constant 3.200000e+01 : f32
    %9 = vector.broadcast %cst_6 : f32 to vector<8x1xf32>
    %10 = arith.divf %8, %9 : vector<8x1xf32>
    %11 = vector.broadcast %10 : vector<8x1xf32> to vector<8x32xf32>
    %12 = arith.subf %1, %11 : vector<8x32xf32>
    %13 = arith.mulf %12, %12 : vector<8x32xf32>
    %cst_7 = arith.constant dense<0.000000e+00> : vector<8xf32>
    %14 = vector.multi_reduction <add>, %13, %cst_7 [1] : vector<8x32xf32> to vector<8xf32>
    %15 = vector.shape_cast %14 : vector<8xf32> to vector<8x1xf32>
    %cst_8 = arith.constant 3.200000e+01 : f32
    %16 = vector.broadcast %cst_8 : f32 to vector<8x1xf32>
    %17 = arith.divf %15, %16 : vector<8x1xf32>
    %18 = vector.broadcast %10 : vector<8x1xf32> to vector<8x32xf32>
    %19 = arith.subf %1, %18 : vector<8x32xf32>
    %cst_9 = arith.constant 9.99999974E-6 : f32
    %20 = vector.broadcast %cst_9 : f32 to vector<8x1xf32>
    %21 = arith.addf %17, %20 : vector<8x1xf32>
    %22 = math.rsqrt %21 : vector<8x1xf32>
    %23 = vector.broadcast %22 : vector<8x1xf32> to vector<8x32xf32>
    %24 = arith.mulf %19, %23 : vector<8x32xf32>
    %25 = vector.broadcast %5 : vector<1x32xf32> to vector<8x32xf32>
    %26 = arith.mulf %24, %25 : vector<8x32xf32>
    %27 = vector.broadcast %6 : vector<1x32xf32> to vector<8x32xf32>
    %28 = arith.addf %26, %27 : vector<8x32xf32>
    %29 = arith.truncf %28 : vector<8x32xf32> to vector<8x32xbf16>
    %c0_10 = arith.constant 0 : index
    %c0_11 = arith.constant 0 : index
    %30 = vector.load %arg4[%c0_10, %c0_11] : memref<32x96xbf16, #tpu.memory_space<vmem>>, vector<32x96xbf16>
    %cst_12 = arith.constant dense<0.000000e+00> : vector<8x96xf32>
    %31 = tpu.matmul %29, %30, %cst_12 {dimension_numbers = #tpu.dot_dimension_numbers<[1], [0], [0], [1], [0, 0, 1, 1], [], []>} : vector<8x32xbf16>, vector<32x96xbf16>, vector<8x96xf32> -> vector<8x96xf32>
    %c0_13 = arith.constant 0 : index
    %c0_14 = arith.constant 0 : index
    %32 = vector.load %arg5[%c0_13, %c0_14] : memref<1x96xf32, #tpu.memory_space<vmem>>, vector<1x96xf32>
    %33 = vector.broadcast %32 : vector<1x96xf32> to vector<8x96xf32>
    %34 = arith.addf %31, %33 : vector<8x96xf32>
    %35 = vector.extract_strided_slice %34 {offsets = [0, 0], sizes = [8, 32], strides = [1, 1]} : vector<8x96xf32> to vector<8x32xf32>
    %cst_15 = arith.constant 0.353553385 : f32
    %36 = vector.broadcast %cst_15 : f32 to vector<8x32xf32>
    %37 = arith.mulf %35, %36 : vector<8x32xf32>
    %38 = vector.extract_strided_slice %34 {offsets = [0, 32], sizes = [8, 32], strides = [1, 1]} : vector<8x96xf32> to vector<8x32xf32>
    %39 = vector.extract_strided_slice %34 {offsets = [0, 64], sizes = [8, 32], strides = [1, 1]} : vector<8x96xf32> to vector<8x32xf32>
    %40 = vector.extract_strided_slice %37 {offsets = [0, 0], sizes = [8, 8], strides = [1, 1]} : vector<8x32xf32> to vector<8x8xf32>
    %41 = vector.extract_strided_slice %37 {offsets = [0, 8], sizes = [8, 8], strides = [1, 1]} : vector<8x32xf32> to vector<8x8xf32>
    %42 = vector.extract_strided_slice %37 {offsets = [0, 16], sizes = [8, 8], strides = [1, 1]} : vector<8x32xf32> to vector<8x8xf32>
    %43 = vector.extract_strided_slice %37 {offsets = [0, 24], sizes = [8, 8], strides = [1, 1]} : vector<8x32xf32> to vector<8x8xf32>
    %44 = vector.shape_cast %40 : vector<8x8xf32> to vector<1x8x8xf32>
    %45 = vector.shape_cast %41 : vector<8x8xf32> to vector<1x8x8xf32>
    %46 = vector.shape_cast %42 : vector<8x8xf32> to vector<1x8x8xf32>
    %47 = vector.shape_cast %43 : vector<8x8xf32> to vector<1x8x8xf32>
    %48 = tpu.concatenate %44, %45, %46, %47 in 0 : vector<1x8x8xf32>, vector<1x8x8xf32>, vector<1x8x8xf32>, vector<1x8x8xf32> -> vector<4x8x8xf32>
    %49 = arith.truncf %48 : vector<4x8x8xf32> to vector<4x8x8xbf16>
    %50 = vector.extract_strided_slice %38 {offsets = [0, 0], sizes = [8, 8], strides = [1, 1]} : vector<8x32xf32> to vector<8x8xf32>
    %51 = vector.extract_strided_slice %38 {offsets = [0, 8], sizes = [8, 8], strides = [1, 1]} : vector<8x32xf32> to vector<8x8xf32>
    %52 = vector.extract_strided_slice %38 {offsets = [0, 16], sizes = [8, 8], strides = [1, 1]} : vector<8x32xf32> to vector<8x8xf32>
    %53 = vector.extract_strided_slice %38 {offsets = [0, 24], sizes = [8, 8], strides = [1, 1]} : vector<8x32xf32> to vector<8x8xf32>
    %54 = vector.shape_cast %50 : vector<8x8xf32> to vector<1x8x8xf32>
    %55 = vector.shape_cast %51 : vector<8x8xf32> to vector<1x8x8xf32>
    %56 = vector.shape_cast %52 : vector<8x8xf32> to vector<1x8x8xf32>
    %57 = vector.shape_cast %53 : vector<8x8xf32> to vector<1x8x8xf32>
    %58 = tpu.concatenate %54, %55, %56, %57 in 0 : vector<1x8x8xf32>, vector<1x8x8xf32>, vector<1x8x8xf32>, vector<1x8x8xf32> -> vector<4x8x8xf32>
    %59 = arith.truncf %58 : vector<4x8x8xf32> to vector<4x8x8xbf16>
    %60 = vector.extract_strided_slice %39 {offsets = [0, 0], sizes = [8, 8], strides = [1, 1]} : vector<8x32xf32> to vector<8x8xf32>
    %61 = vector.extract_strided_slice %39 {offsets = [0, 8], sizes = [8, 8], strides = [1, 1]} : vector<8x32xf32> to vector<8x8xf32>
    %62 = vector.extract_strided_slice %39 {offsets = [0, 16], sizes = [8, 8], strides = [1, 1]} : vector<8x32xf32> to vector<8x8xf32>
    %63 = vector.extract_strided_slice %39 {offsets = [0, 24], sizes = [8, 8], strides = [1, 1]} : vector<8x32xf32> to vector<8x8xf32>
    %64 = vector.shape_cast %60 : vector<8x8xf32> to vector<1x8x8xf32>
    %65 = vector.shape_cast %61 : vector<8x8xf32> to vector<1x8x8xf32>
    %66 = vector.shape_cast %62 : vector<8x8xf32> to vector<1x8x8xf32>
    %67 = vector.shape_cast %63 : vector<8x8xf32> to vector<1x8x8xf32>
    %68 = tpu.concatenate %64, %65, %66, %67 in 0 : vector<1x8x8xf32>, vector<1x8x8xf32>, vector<1x8x8xf32>, vector<1x8x8xf32> -> vector<4x8x8xf32>
    %69 = arith.truncf %68 : vector<4x8x8xf32> to vector<4x8x8xbf16>
    "tpu.trace_start"() <{level = 10 : i32, message = "nqd,nkd->nqk"}> : () -> ()
    %cst_16 = arith.constant dense<0.000000e+00> : vector<4x8x8xf32>
    %70 = tpu.matmul %49, %59, %cst_16 {dimension_numbers = #tpu.dot_dimension_numbers<[2], [2], [1], [1], [0, 0, 0, 1, 1, 1], [0], [0]>} : vector<4x8x8xbf16>, vector<4x8x8xbf16>, vector<4x8x8xf32> -> vector<4x8x8xf32>
    "tpu.trace_stop"() : () -> ()
    %71 = vector.shape_cast %4 : vector<8x8xi1> to vector<1x8x8xi1>
    %cst_17 = arith.constant -1.000000e+30 : f32
    %72 = vector.shape_cast %71 : vector<1x8x8xi1> to vector<1x8x8xi1>
    %73 = vector.broadcast %72 : vector<1x8x8xi1> to vector<4x8x8xi1>
    %74 = vector.broadcast %cst_17 : f32 to vector<4x8x8xf32>
    %75 = arith.select %73, %70, %74 : vector<4x8x8xi1>, vector<4x8x8xf32>
    %cst_18 = arith.constant dense<0xFF800000> : vector<4x8xf32>
    %76 = vector.multi_reduction <maximumf>, %75, %cst_18 [2] : vector<4x8x8xf32> to vector<4x8xf32>
    %77 = vector.shape_cast %76 : vector<4x8xf32> to vector<4x8x1xf32>
    %78 = vector.broadcast %77 : vector<4x8x1xf32> to vector<4x8x8xf32>
    %79 = arith.subf %75, %78 : vector<4x8x8xf32>
    %80 = math.exp %79 : vector<4x8x8xf32>
    %cst_19 = arith.constant dense<0.000000e+00> : vector<4x8xf32>
    %81 = vector.multi_reduction <add>, %80, %cst_19 [2] : vector<4x8x8xf32> to vector<4x8xf32>
    %82 = vector.shape_cast %81 : vector<4x8xf32> to vector<4x8x1xf32>
    %83 = tpu.reciprocal %82 {approx = true} : vector<4x8x1xf32> -> vector<4x8x1xf32>
    %84 = vector.broadcast %83 : vector<4x8x1xf32> to vector<4x8x8xf32>
    %85 = arith.mulf %80, %84 : vector<4x8x8xf32>
    %86 = arith.truncf %85 : vector<4x8x8xf32> to vector<4x8x8xbf16>
    "tpu.trace_start"() <{level = 10 : i32, message = "nqk,nkd->nqd"}> : () -> ()
    %cst_20 = arith.constant dense<0.000000e+00> : vector<4x8x8xf32>
    %87 = tpu.matmul %86, %69, %cst_20 {dimension_numbers = #tpu.dot_dimension_numbers<[2], [1], [1], [2], [0, 0, 0, 1, 1, 2], [0], [0]>} : vector<4x8x8xbf16>, vector<4x8x8xbf16>, vector<4x8x8xf32> -> vector<4x8x8xf32>
    "tpu.trace_stop"() : () -> ()
    %88 = vector.extract_strided_slice %87 {offsets = [0, 0, 0], sizes = [1, 8, 8], strides = [1, 1, 1]} : vector<4x8x8xf32> to vector<1x8x8xf32>
    %89 = vector.shape_cast %88 : vector<1x8x8xf32> to vector<8x8xf32>
    %c0_21 = arith.constant 0 : index
    %c0_22 = arith.constant 0 : index
    %90 = vector.load %arg15[%c0_21, %c0_22] : memref<8x32xf32, #tpu.memory_space<vmem>>, vector<8x8xf32>
    tpu.vector_store %arg15[%c0_21, %c0_22], %89 {strides = array<i32>} : memref<8x32xf32, #tpu.memory_space<vmem>>, vector<8x8xf32>,
    %91 = vector.extract_strided_slice %87 {offsets = [1, 0, 0], sizes = [1, 8, 8], strides = [1, 1, 1]} : vector<4x8x8xf32> to vector<1x8x8xf32>
    %92 = vector.shape_cast %91 : vector<1x8x8xf32> to vector<8x8xf32>
    %c0_23 = arith.constant 0 : index
    %c8 = arith.constant 8 : index
    %93 = vector.load %arg15[%c0_23, %c8] : memref<8x32xf32, #tpu.memory_space<vmem>>, vector<8x8xf32>
    tpu.vector_store %arg15[%c0_23, %c8], %92 {strides = array<i32>} : memref<8x32xf32, #tpu.memory_space<vmem>>, vector<8x8xf32>,
    %94 = vector.extract_strided_slice %87 {offsets = [2, 0, 0], sizes = [1, 8, 8], strides = [1, 1, 1]} : vector<4x8x8xf32> to vector<1x8x8xf32>
    %95 = vector.shape_cast %94 : vector<1x8x8xf32> to vector<8x8xf32>
    %c0_24 = arith.constant 0 : index
    %c16 = arith.constant 16 : index
    %96 = vector.load %arg15[%c0_24, %c16] : memref<8x32xf32, #tpu.memory_space<vmem>>, vector<8x8xf32>
    tpu.vector_store %arg15[%c0_24, %c16], %95 {strides = array<i32>} : memref<8x32xf32, #tpu.memory_space<vmem>>, vector<8x8xf32>,
    %97 = vector.extract_strided_slice %87 {offsets = [3, 0, 0], sizes = [1, 8, 8], strides = [1, 1, 1]} : vector<4x8x8xf32> to vector<1x8x8xf32>
    %98 = vector.shape_cast %97 : vector<1x8x8xf32> to vector<8x8xf32>
    %c0_25 = arith.constant 0 : index
    %c24 = arith.constant 24 : index
    %99 = vector.load %arg15[%c0_25, %c24] : memref<8x32xf32, #tpu.memory_space<vmem>>, vector<8x8xf32>
    tpu.vector_store %arg15[%c0_25, %c24], %98 {strides = array<i32>} : memref<8x32xf32, #tpu.memory_space<vmem>>, vector<8x8xf32>,
    %c0_26 = arith.constant 0 : index
    %c0_27 = arith.constant 0 : index
    %100 = vector.load %arg15[%c0_26, %c0_27] : memref<8x32xf32, #tpu.memory_space<vmem>>, vector<8x32xf32>
    %101 = arith.truncf %100 : vector<8x32xf32> to vector<8x32xbf16>
    %c0_28 = arith.constant 0 : index
    %c0_29 = arith.constant 0 : index
    %102 = vector.load %arg6[%c0_28, %c0_29] : memref<32x32xbf16, #tpu.memory_space<vmem>>, vector<32x32xbf16>
    %cst_30 = arith.constant dense<0.000000e+00> : vector<8x32xf32>
    %103 = tpu.matmul %101, %102, %cst_30 {dimension_numbers = #tpu.dot_dimension_numbers<[1], [0], [0], [1], [0, 0, 1, 1], [], []>} : vector<8x32xbf16>, vector<32x32xbf16>, vector<8x32xf32> -> vector<8x32xf32>
    %c0_31 = arith.constant 0 : index
    %c0_32 = arith.constant 0 : index
    %104 = vector.load %arg7[%c0_31, %c0_32] : memref<1x32xf32, #tpu.memory_space<vmem>>, vector<1x32xf32>
    %105 = vector.broadcast %104 : vector<1x32xf32> to vector<8x32xf32>
    %106 = arith.addf %103, %105 : vector<8x32xf32>
    %107 = arith.addf %1, %106 : vector<8x32xf32>
    %c0_33 = arith.constant 0 : index
    %c0_34 = arith.constant 0 : index
    %108 = vector.load %arg8[%c0_33, %c0_34] : memref<1x32xf32, #tpu.memory_space<vmem>>, vector<1x32xf32>
    %c0_35 = arith.constant 0 : index
    %c0_36 = arith.constant 0 : index
    %109 = vector.load %arg9[%c0_35, %c0_36] : memref<1x32xf32, #tpu.memory_space<vmem>>, vector<1x32xf32>
    %cst_37 = arith.constant dense<0.000000e+00> : vector<8xf32>
    %110 = vector.multi_reduction <add>, %107, %cst_37 [1] : vector<8x32xf32> to vector<8xf32>
    %111 = vector.shape_cast %110 : vector<8xf32> to vector<8x1xf32>
    %cst_38 = arith.constant 3.200000e+01 : f32
    %112 = vector.broadcast %cst_38 : f32 to vector<8x1xf32>
    %113 = arith.divf %111, %112 : vector<8x1xf32>
    %114 = vector.broadcast %113 : vector<8x1xf32> to vector<8x32xf32>
    %115 = arith.subf %107, %114 : vector<8x32xf32>
    %116 = arith.mulf %115, %115 : vector<8x32xf32>
    %cst_39 = arith.constant dense<0.000000e+00> : vector<8xf32>
    %117 = vector.multi_reduction <add>, %116, %cst_39 [1] : vector<8x32xf32> to vector<8xf32>
    %118 = vector.shape_cast %117 : vector<8xf32> to vector<8x1xf32>
    %cst_40 = arith.constant 3.200000e+01 : f32
    %119 = vector.broadcast %cst_40 : f32 to vector<8x1xf32>
    %120 = arith.divf %118, %119 : vector<8x1xf32>
    %121 = vector.broadcast %113 : vector<8x1xf32> to vector<8x32xf32>
    %122 = arith.subf %107, %121 : vector<8x32xf32>
    %cst_41 = arith.constant 9.99999974E-6 : f32
    %123 = vector.broadcast %cst_41 : f32 to vector<8x1xf32>
    %124 = arith.addf %120, %123 : vector<8x1xf32>
    %125 = math.rsqrt %124 : vector<8x1xf32>
    %126 = vector.broadcast %125 : vector<8x1xf32> to vector<8x32xf32>
    %127 = arith.mulf %122, %126 : vector<8x32xf32>
    %128 = vector.broadcast %108 : vector<1x32xf32> to vector<8x32xf32>
    %129 = arith.mulf %127, %128 : vector<8x32xf32>
    %130 = vector.broadcast %109 : vector<1x32xf32> to vector<8x32xf32>
    %131 = arith.addf %129, %130 : vector<8x32xf32>
    %132 = arith.truncf %131 : vector<8x32xf32> to vector<8x32xbf16>
    %c0_42 = arith.constant 0 : index
    %c0_43 = arith.constant 0 : index
    %133 = vector.load %arg10[%c0_42, %c0_43] : memref<32x128xbf16, #tpu.memory_space<vmem>>, vector<32x128xbf16>
    %cst_44 = arith.constant dense<0.000000e+00> : vector<8x128xf32>
    %134 = tpu.matmul %132, %133, %cst_44 {dimension_numbers = #tpu.dot_dimension_numbers<[1], [0], [0], [1], [0, 0, 1, 1], [], []>} : vector<8x32xbf16>, vector<32x128xbf16>, vector<8x128xf32> -> vector<8x128xf32>
    %c0_45 = arith.constant 0 : index
    %c0_46 = arith.constant 0 : index
    %135 = vector.load %arg11[%c0_45, %c0_46] : memref<1x128xf32, #tpu.memory_space<vmem>>, vector<1x128xf32>
    %136 = vector.broadcast %135 : vector<1x128xf32> to vector<8x128xf32>
    %137 = arith.addf %134, %136 : vector<8x128xf32>
    %cst_47 = arith.constant 5.000000e-01 : f32
    %138 = vector.broadcast %cst_47 : f32 to vector<8x128xf32>
    %139 = arith.mulf %138, %137 : vector<8x128xf32>
    %cst_48 = arith.constant 4.471500e-02 : f32
    %140 = vector.broadcast %cst_48 : f32 to vector<8x128xf32>
    %141 = arith.mulf %140, %137 : vector<8x128xf32>
    %142 = arith.mulf %141, %137 : vector<8x128xf32>
    %143 = arith.mulf %142, %137 : vector<8x128xf32>
    %144 = arith.addf %137, %143 : vector<8x128xf32>
    %cst_49 = arith.constant 0.797884583 : f32
    %145 = vector.broadcast %cst_49 : f32 to vector<8x128xf32>
    %146 = arith.mulf %145, %144 : vector<8x128xf32>
    %147 = math.tanh %146 : vector<8x128xf32>
    %cst_50 = arith.constant 1.000000e+00 : f32
    %148 = vector.broadcast %cst_50 : f32 to vector<8x128xf32>
    %149 = arith.addf %148, %147 : vector<8x128xf32>
    %150 = arith.mulf %139, %149 : vector<8x128xf32>
    %151 = arith.truncf %150 : vector<8x128xf32> to vector<8x128xbf16>
    %c0_51 = arith.constant 0 : index
    %c0_52 = arith.constant 0 : index
    %152 = vector.load %arg12[%c0_51, %c0_52] : memref<128x32xbf16, #tpu.memory_space<vmem>>, vector<128x32xbf16>
    %cst_53 = arith.constant dense<0.000000e+00> : vector<8x32xf32>
    %153 = tpu.matmul %151, %152, %cst_53 {dimension_numbers = #tpu.dot_dimension_numbers<[1], [0], [0], [1], [0, 0, 1, 1], [], []>} : vector<8x128xbf16>, vector<128x32xbf16>, vector<8x32xf32> -> vector<8x32xf32>
    %c0_54 = arith.constant 0 : index
    %c0_55 = arith.constant 0 : index
    %154 = vector.load %arg13[%c0_54, %c0_55] : memref<1x32xf32, #tpu.memory_space<vmem>>, vector<1x32xf32>
    %155 = vector.broadcast %154 : vector<1x32xf32> to vector<8x32xf32>
    %156 = arith.addf %153, %155 : vector<8x32xf32>
    %157 = arith.addf %107, %156 : vector<8x32xf32>
    %c0_56 = arith.constant 0 : index
    %c0_57 = arith.constant 0 : index
    %c0_58 = arith.constant 0 : index
    %158 = vector.load %arg14[%c0_56, %c0_57, %c0_58] : memref<1x8x32xf32, #tpu.memory_space<vmem>>, vector<1x8x32xf32>
    %159 = vector.shape_cast %158 : vector<1x8x32xf32> to vector<8x32xf32>
    %160 = vector.shape_cast %157 : vector<8x32xf32> to vector<1x8x32xf32>
    tpu.vector_store %arg14[%c0_56, %c0_57, %c0_58], %160 {strides = array<i32>} : memref<1x8x32xf32, #tpu.memory_space<vmem>>, vector<1x8x32xf32>,
    return
  }
  func.func @transform_0(%arg0: i32) -> (i32, i32, i32) {
    %c0_i32 = arith.constant 0 : i32
    %c0_i32_0 = arith.constant 0 : i32
    %c0_i32_1 = arith.constant 0 : i32
    return %arg0, %c0_i32, %c0_i32_0 : i32, i32, i32
  }
  func.func @transform_1(%arg0: i32) -> (i32, i32) {
    %c0_i32 = arith.constant 0 : i32
    %c0_i32_0 = arith.constant 0 : i32
    %c0_i32_1 = arith.constant 0 : i32
    return %c0_i32, %c0_i32_0 : i32, i32
  }
  func.func @transform_2(%arg0: i32) -> (i32, i32) {
    %c0_i32 = arith.constant 0 : i32
    %c0_i32_0 = arith.constant 0 : i32
    %c0_i32_1 = arith.constant 0 : i32
    return %c0_i32, %c0_i32_0 : i32, i32
  }
  func.func @transform_3(%arg0: i32) -> (i32, i32) {
    %c0_i32 = arith.constant 0 : i32
    %c0_i32_0 = arith.constant 0 : i32
    %c0_i32_1 = arith.constant 0 : i32
    return %c0_i32, %c0_i32_0 : i32, i32
  }
  func.func @transform_4(%arg0: i32) -> (i32, i32) {
    %c0_i32 = arith.constant 0 : i32
    %c0_i32_0 = arith.constant 0 : i32
    %c0_i32_1 = arith.constant 0 : i32
    return %c0_i32, %c0_i32_0 : i32, i32
  }
  func.func @transform_5(%arg0: i32) -> (i32, i32) {
    %c0_i32 = arith.constant 0 : i32
    %c0_i32_0 = arith.constant 0 : i32
    %c0_i32_1 = arith.constant 0 : i32
    return %c0_i32, %c0_i32_0 : i32, i32
  }
  func.func @transform_6(%arg0: i32) -> (i32, i32) {
    %c0_i32 = arith.constant 0 : i32
    %c0_i32_0 = arith.constant 0 : i32
    %c0_i32_1 = arith.constant 0 : i32
    return %c0_i32, %c0_i32_0 : i32, i32
  }
  func.func @transform_7(%arg0: i32) -> (i32, i32) {
    %c0_i32 = arith.constant 0 : i32
    %c0_i32_0 = arith.constant 0 : i32
    %c0_i32_1 = arith.constant 0 : i32
    return %c0_i32, %c0_i32_0 : i32, i32
  }
  func.func @transform_8(%arg0: i32) -> (i32, i32) {
    %c0_i32 = arith.constant 0 : i32
    %c0_i32_0 = arith.constant 0 : i32
    %c0_i32_1 = arith.constant 0 : i32
    return %c0_i32, %c0_i32_0 : i32, i32
  }
  func.func @transform_9(%arg0: i32) -> (i32, i32) {
    %c0_i32 = arith.constant 0 : i32
    %c0_i32_0 = arith.constant 0 : i32
    %c0_i32_1 = arith.constant 0 : i32
    return %c0_i32, %c0_i32_0 : i32, i32
  }
  func.func @transform_10(%arg0: i32) -> (i32, i32) {
    %c0_i32 = arith.constant 0 : i32
    %c0_i32_0 = arith.constant 0 : i32
    %c0_i32_1 = arith.constant 0 : i32
    return %c0_i32, %c0_i32_0 : i32, i32
  }
  func.func @transform_11(%arg0: i32) -> (i32, i32) {
    %c0_i32 = arith.constant 0 : i32
    %c0_i32_0 = arith.constant 0 : i32
    %c0_i32_1 = arith.constant 0 : i32
    return %c0_i32, %c0_i32_0 : i32, i32
  }
  func.func @transform_12(%arg0: i32) -> (i32, i32) {
    %c0_i32 = arith.constant 0 : i32
    %c0_i32_0 = arith.constant 0 : i32
    %c0_i32_1 = arith.constant 0 : i32
    return %c0_i32, %c0_i32_0 : i32, i32
  }
  func.func @transform_13(%arg0: i32) -> (i32, i32, i32) {
    %c0_i32 = arith.constant 0 : i32
    %c0_i32_0 = arith.constant 0 : i32
    %c0_i32_1 = arith.constant 0 : i32
    return %arg0, %c0_i32, %c0_i32_0 : i32, i32, i32
  }
}

</mosaic_0001>

<llo_original>
// kernel: tpu_custom_call.1
$region0: #{tpu_custom_call.1}
  #allocation0 [shape = 'u32[]', space=smem, size = 0x4, offset = 0x4, fixed_abs, tag = 'smem constant byte address 0x4 - core index']
  #allocation1 [shape = 'u32[144,128]{1,0:T(1,128)}', space=vmem, size = 0x12000, scoped, tag = 'internal scratch']
  #allocation2 [shape = 'f32[8,32]{1,0:T(8,128)}', space=vmem, size = 0x1000, scoped, tag = 'scratch operand']
  %s0 = inlined_call_operand.vmem [shape: f32[2,8,32], index: 0, kind: input, shape index: {}]
  %s1 = inlined_call_operand.vmem [shape: f32[1,32], index: 1, kind: input, shape index: {}]
  %s2 = inlined_call_operand.vmem [shape: f32[1,32], index: 2, kind: input, shape index: {}]
  %s3 = inlined_call_operand.vmem [shape: bf16[32,96], index: 3, kind: input, shape index: {}]
  %s4 = inlined_call_operand.vmem [shape: f32[1,96], index: 4, kind: input, shape index: {}]
  %s5 = inlined_call_operand.vmem [shape: bf16[32,32], index: 5, kind: input, shape index: {}]
  %s6 = inlined_call_operand.vmem [shape: f32[1,32], index: 6, kind: input, shape index: {}]
  %s7 = inlined_call_operand.vmem [shape: f32[1,32], index: 7, kind: input, shape index: {}]
  %s8 = inlined_call_operand.vmem [shape: f32[1,32], index: 8, kind: input, shape index: {}]
  %s9 = inlined_call_operand.vmem [shape: bf16[32,128], index: 9, kind: input, shape index: {}]
  %s10 = inlined_call_operand.vmem [shape: f32[1,128], index: 10, kind: input, shape index: {}]
  %s11 = inlined_call_operand.vmem [shape: bf16[128,32], index: 11, kind: input, shape index: {}]
  %s12 = inlined_call_operand.vmem [shape: f32[1,32], index: 12, kind: input, shape index: {}]
  %s13 = inlined_call_operand.hbm [shape: f32[2,8,32], index: 13, kind: output, shape index: {}]
  %s14 = sld [smem:[#allocation0]]
  $region85: #{tpu_custom_call.1} parent=0
    _
  %s16 = ssub.s32 1, %s14
  %s17 = scalar_select 0, %s16, %s14
  $region1: #{tpu_custom_call.1} parent=0
    #allocation3 [shape = 'u8[8192]{0}', space=vmem, size = 0x2000, scoped, tag = 'output window, operand 0']
    #allocation4 [shape = 's32[2]{0}', space=sflag, size = 0x8, scoped, tag = 'scoped memory for tpu_custom_call.1']
    %18 = vsyncpa [#allocation4], 0
    %s19 = scalar_lea.sflag [#allocation4], 1
    %20 = vsyncpa %s19, 0
    loop: start=0, step=1, limit=4
    $region2: #{tpu_custom_call.1} parent=1 // loop_pre_header
      _
    $region3: #{tpu_custom_call.1} parent=1 // loop_header
      %s22 = sphi 0, %s26
      %p23 = scmp.ge.s32.totalorder %s22, 4
      %s32 = sphi 0, %s34
      %s35 = sphi 0, %s32
      %s36 = sphi 0, %s35
      %s52 = sphi 0, %s36
      %s56 = sphi 0, %s56
      %s58 = sphi 0, %s56
      %s59 = sphi 0, %s58
      %s73 = sphi 0, %s59
      %s77 = sphi 0, %s77
      %s79 = sphi 0, %s77
      %s80 = sphi 0, %s79
      %s94 = sphi 0, %s80
      %s98 = sphi 0, %s98
      %s100 = sphi 0, %s98
      %s101 = sphi 0, %s100
      %s115 = sphi 0, %s101
      %s119 = sphi 0, %s119
      %s121 = sphi 0, %s119
      %s122 = sphi 0, %s121
      %s136 = sphi 0, %s122
      %s140 = sphi 0, %s140
      %s142 = sphi 0, %s140
      %s143 = sphi 0, %s142
      %s157 = sphi 0, %s143
      %s161 = sphi 0, %s161
      %s163 = sphi 0, %s161
      %s164 = sphi 0, %s163
      %s178 = sphi 0, %s164
      %s182 = sphi 0, %s182
      %s184 = sphi 0, %s182
      %s185 = sphi 0, %s184
      %s199 = sphi 0, %s185
      %s203 = sphi 0, %s203
      %s205 = sphi 0, %s203
      %s206 = sphi 0, %s205
      %s220 = sphi 0, %s206
      %s224 = sphi 0, %s224
      %s226 = sphi 0, %s224
      %s227 = sphi 0, %s226
      %s241 = sphi 0, %s227
      %s245 = sphi 0, %s245
      %s247 = sphi 0, %s245
      %s248 = sphi 0, %s247
      %s262 = sphi 0, %s248
      %s266 = sphi 0, %s266
      %s268 = sphi 0, %s266
      %s269 = sphi 0, %s268
      %s283 = sphi 0, %s269
      %s287 = sphi 0, %s287
      %s289 = sphi 0, %s287
      %s290 = sphi 0, %s289
      %s304 = sphi 0, %s290
      %s310 = sphi 0, %s312
      %s313 = sphi 0, %s310
      %s314 = sphi 0, %s313
      %s330 = sphi 0, %s314
    $region4: #{tpu_custom_call.1} parent=1 // loop_header_branch
      %25 = sbr.rel (%p23) target = $region8
    $region5: #{tpu_custom_call.1} parent=1 // loop_body
      %s27 = ssub.s32 %s22, 1
      %s28 = ssub.s32 %s22, 2
      %s29 = sadd.s32 %s22, 1
      %s30 = ssub.s32 %s22, %s29
      %p31 = scmp.eq.s32.totalorder %s30, 0
      %s33 = sadd.s32 %s32, 1
      %s34 = scalar_select %p31, %s32, %s33
      %p37 = pneg %p31
      %p38 = scmp.eq.s32.totalorder %s22, 1
      %p39 = por %p37, %p38
      %p40 = scmp.ne.s32.totalorder %s32, %s35
      %p41 = scmp.eq.s32.totalorder %s22, 0
      %p42 = por %p40, %p41
      %p43 = scmp.ne.s32.totalorder %s32, %s35
      %p44 = scmp.eq.s32.totalorder %s27, 1
      %p45 = por %p43, %p44
      %p46 = scmp.ne.s32.totalorder %s35, %s36
      %p47 = scmp.eq.s32.totalorder %s27, 0
      %p48 = por %p46, %p47
      %p49 = scmp.ne.s32.totalorder %s35, %s36
      %p50 = scmp.eq.s32.totalorder %s28, 1
      %p51 = por %p49, %p50
      %p53 = scmp.ne.s32.totalorder %s36, %s52
      %p54 = scmp.eq.s32.totalorder %s28, 0
      %p55 = por %p53, %p54
      %s57 = sadd.s32 %s56, 1
      %p60 = scmp.eq.s32.totalorder %s22, 1
      %p61 = scmp.ne.s32.totalorder %s56, %s58
      %p62 = scmp.eq.s32.totalorder %s22, 0
      %p63 = por %p61, %p62
      %p64 = scmp.ne.s32.totalorder %s56, %s58
      %p65 = scmp.eq.s32.totalorder %s27, 1
      %p66 = por %p64, %p65
      %p67 = scmp.ne.s32.totalorder %s58, %s59
      %p68 = scmp.eq.s32.totalorder %s27, 0
      %p69 = por %p67, %p68
      %p70 = scmp.ne.s32.totalorder %s58, %s59
      %p71 = scmp.eq.s32.totalorder %s28, 1
      %p72 = por %p70, %p71
      %p74 = scmp.ne.s32.totalorder %s59, %s73
      %p75 = scmp.eq.s32.totalorder %s28, 0
      %p76 = por %p74, %p75
      %s78 = sadd.s32 %s77, 1
      %p81 = scmp.eq.s32.totalorder %s22, 1
      %p82 = scmp.ne.s32.totalorder %s77, %s79
      %p83 = scmp.eq.s32.totalorder %s22, 0
      %p84 = por %p82, %p83
      %p85 = scmp.ne.s32.totalorder %s77, %s79
      %p86 = scmp.eq.s32.totalorder %s27, 1
      %p87 = por %p85, %p86
      %p88 = scmp.ne.s32.totalorder %s79, %s80
      %p89 = scmp.eq.s32.totalorder %s27, 0
      %p90 = por %p88, %p89
      %p91 = scmp.ne.s32.totalorder %s79, %s80
      %p92 = scmp.eq.s32.totalorder %s28, 1
      %p93 = por %p91, %p92
      %p95 = scmp.ne.s32.totalorder %s80, %s94
      %p96 = scmp.eq.s32.totalorder %s28, 0
      %p97 = por %p95, %p96
      %s99 = sadd.s32 %s98, 1
      %p102 = scmp.eq.s32.totalorder %s22, 1
      %p103 = scmp.ne.s32.totalorder %s98, %s100
      %p104 = scmp.eq.s32.totalorder %s22, 0
      %p105 = por %p103, %p104
      %p106 = scmp.ne.s32.totalorder %s98, %s100
      %p107 = scmp.eq.s32.totalorder %s27, 1
      %p108 = por %p106, %p107
      %p109 = scmp.ne.s32.totalorder %s100, %s101
      %p110 = scmp.eq.s32.totalorder %s27, 0
      %p111 = por %p109, %p110
      %p112 = scmp.ne.s32.totalorder %s100, %s101
      %p113 = scmp.eq.s32.totalorder %s28, 1
      %p114 = por %p112, %p113
      %p116 = scmp.ne.s32.totalorder %s101, %s115
      %p117 = scmp.eq.s32.totalorder %s28, 0
      %p118 = por %p116, %p117
      %s120 = sadd.s32 %s119, 1
      %p123 = scmp.eq.s32.totalorder %s22, 1
      %p124 = scmp.ne.s32.totalorder %s119, %s121
      %p125 = scmp.eq.s32.totalorder %s22, 0
      %p126 = por %p124, %p125
      %p127 = scmp.ne.s32.totalorder %s119, %s121
      %p128 = scmp.eq.s32.totalorder %s27, 1
      %p129 = por %p127, %p128
      %p130 = scmp.ne.s32.totalorder %s121, %s122
      %p131 = scmp.eq.s32.totalorder %s27, 0
      %p132 = por %p130, %p131
      %p133 = scmp.ne.s32.totalorder %s121, %s122
      %p134 = scmp.eq.s32.totalorder %s28, 1
      %p135 = por %p133, %p134
      %p137 = scmp.ne.s32.totalorder %s122, %s136
      %p138 = scmp.eq.s32.totalorder %s28, 0
      %p139 = por %p137, %p138
      %s141 = sadd.s32 %s140, 1
      %p144 = scmp.eq.s32.totalorder %s22, 1
      %p145 = scmp.ne.s32.totalorder %s140, %s142
      %p146 = scmp.eq.s32.totalorder %s22, 0
      %p147 = por %p145, %p146
      %p148 = scmp.ne.s32.totalorder %s140, %s142
      %p149 = scmp.eq.s32.totalorder %s27, 1
      %p150 = por %p148, %p149
      %p151 = scmp.ne.s32.totalorder %s142, %s143
      %p152 = scmp.eq.s32.totalorder %s27, 0
      %p153 = por %p151, %p152
      %p154 = scmp.ne.s32.totalorder %s142, %s143
      %p155 = scmp.eq.s32.totalorder %s28, 1
      %p156 = por %p154, %p155
      %p158 = scmp.ne.s32.totalorder %s143, %s157
      %p159 = scmp.eq.s32.totalorder %s28, 0
      %p160 = por %p158, %p159
      %s162 = sadd.s32 %s161, 1
      %p165 = scmp.eq.s32.totalorder %s22, 1
      %p166 = scmp.ne.s32.totalorder %s161, %s163
      %p167 = scmp.eq.s32.totalorder %s22, 0
      %p168 = por %p166, %p167
      %p169 = scmp.ne.s32.totalorder %s161, %s163
      %p170 = scmp.eq.s32.totalorder %s27, 1
      %p171 = por %p169, %p170
      %p172 = scmp.ne.s32.totalorder %s163, %s164
      %p173 = scmp.eq.s32.totalorder %s27, 0
      %p174 = por %p172, %p173
      %p175 = scmp.ne.s32.totalorder %s163, %s164
      %p176 = scmp.eq.s32.totalorder %s28, 1
      %p177 = por %p175, %p176
      %p179 = scmp.ne.s32.totalorder %s164, %s178
      %p180 = scmp.eq.s32.totalorder %s28, 0
      %p181 = por %p179, %p180
      %s183 = sadd.s32 %s182, 1
      %p186 = scmp.eq.s32.totalorder %s22, 1
      %p187 = scmp.ne.s32.totalorder %s182, %s184
      %p188 = scmp.eq.s32.totalorder %s22, 0
      %p189 = por %p187, %p188
      %p190 = scmp.ne.s32.totalorder %s182, %s184
      %p191 = scmp.eq.s32.totalorder %s27, 1
      %p192 = por %p190, %p191
      %p193 = scmp.ne.s32.totalorder %s184, %s185
      %p194 = scmp.eq.s32.totalorder %s27, 0
      %p195 = por %p193, %p194
      %p196 = scmp.ne.s32.totalorder %s184, %s185
      %p197 = scmp.eq.s32.totalorder %s28, 1
      %p198 = por %p196, %p197
      %p200 = scmp.ne.s32.totalorder %s185, %s199
      %p201 = scmp.eq.s32.totalorder %s28, 0
      %p202 = por %p200, %p201
      %s204 = sadd.s32 %s203, 1
      %p207 = scmp.eq.s32.totalorder %s22, 1
      %p208 = scmp.ne.s32.totalorder %s203, %s205
      %p209 = scmp.eq.s32.totalorder %s22, 0
      %p210 = por %p208, %p209
      %p211 = scmp.ne.s32.totalorder %s203, %s205
      %p212 = scmp.eq.s32.totalorder %s27, 1
      %p213 = por %p211, %p212
      %p214 = scmp.ne.s32.totalorder %s205, %s206
      %p215 = scmp.eq.s32.totalorder %s27, 0
      %p216 = por %p214, %p215
      %p217 = scmp.ne.s32.totalorder %s205, %s206
      %p218 = scmp.eq.s32.totalorder %s28, 1
      %p219 = por %p217, %p218
      %p221 = scmp.ne.s32.totalorder %s206, %s220
      %p222 = scmp.eq.s32.totalorder %s28, 0
      %p223 = por %p221, %p222
      %s225 = sadd.s32 %s224, 1
      %p228 = scmp.eq.s32.totalorder %s22, 1
      %p229 = scmp.ne.s32.totalorder %s224, %s226
      %p230 = scmp.eq.s32.totalorder %s22, 0
      %p231 = por %p229, %p230
      %p232 = scmp.ne.s32.totalorder %s224, %s226
      %p233 = scmp.eq.s32.totalorder %s27, 1
      %p234 = por %p232, %p233
      %p235 = scmp.ne.s32.totalorder %s226, %s227
      %p236 = scmp.eq.s32.totalorder %s27, 0
      %p237 = por %p235, %p236
      %p238 = scmp.ne.s32.totalorder %s226, %s227
      %p239 = scmp.eq.s32.totalorder %s28, 1
      %p240 = por %p238, %p239
      %p242 = scmp.ne.s32.totalorder %s227, %s241
      %p243 = scmp.eq.s32.totalorder %s28, 0
      %p244 = por %p242, %p243
      %s246 = sadd.s32 %s245, 1
      %p249 = scmp.eq.s32.totalorder %s22, 1
      %p250 = scmp.ne.s32.totalorder %s245, %s247
      %p251 = scmp.eq.s32.totalorder %s22, 0
      %p252 = por %p250, %p251
      %p253 = scmp.ne.s32.totalorder %s245, %s247
      %p254 = scmp.eq.s32.totalorder %s27, 1
      %p255 = por %p253, %p254
      %p256 = scmp.ne.s32.totalorder %s247, %s248
      %p257 = scmp.eq.s32.totalorder %s27, 0
      %p258 = por %p256, %p257
      %p259 = scmp.ne.s32.totalorder %s247, %s248
      %p260 = scmp.eq.s32.totalorder %s28, 1
      %p261 = por %p259, %p260
      %p263 = scmp.ne.s32.totalorder %s248, %s262
      %p264 = scmp.eq.s32.totalorder %s28, 0
      %p265 = por %p263, %p264
      %s267 = sadd.s32 %s266, 1
      %p270 = scmp.eq.s32.totalorder %s22, 1
      %p271 = scmp.ne.s32.totalorder %s266, %s268
      %p272 = scmp.eq.s32.totalorder %s22, 0
      %p273 = por %p271, %p272
      %p274 = scmp.ne.s32.totalorder %s266, %s268
      %p275 = scmp.eq.s32.totalorder %s27, 1
      %p276 = por %p274, %p275
      %p277 = scmp.ne.s32.totalorder %s268, %s269
      %p278 = scmp.eq.s32.totalorder %s27, 0
      %p279 = por %p277, %p278
      %p280 = scmp.ne.s32.totalorder %s268, %s269
      %p281 = scmp.eq.s32.totalorder %s28, 1
      %p282 = por %p280, %p281
      %p284 = scmp.ne.s32.totalorder %s269, %s283
      %p285 = scmp.eq.s32.totalorder %s28, 0
      %p286 = por %p284, %p285
      %s288 = sadd.s32 %s287, 1
      %p291 = scmp.eq.s32.totalorder %s22, 1
      %p292 = scmp.ne.s32.totalorder %s287, %s289
      %p293 = scmp.eq.s32.totalorder %s22, 0
      %p294 = por %p292, %p293
      %p295 = scmp.ne.s32.totalorder %s287, %s289
      %p296 = scmp.eq.s32.totalorder %s27, 1
      %p297 = por %p295, %p296
      %p298 = scmp.ne.s32.totalorder %s289, %s290
      %p299 = scmp.eq.s32.totalorder %s27, 0
      %p300 = por %p298, %p299
      %p301 = scmp.ne.s32.totalorder %s289, %s290
      %p302 = scmp.eq.s32.totalorder %s28, 1
      %p303 = por %p301, %p302
      %p305 = scmp.ne.s32.totalorder %s290, %s304
      %p306 = scmp.eq.s32.totalorder %s28, 0
      %p307 = por %p305, %p306
      %s308 = ssub.s32 %s22, %s29
      %p309 = scmp.eq.s32.totalorder %s308, 0
      %s311 = sadd.s32 %s310, 1
      %s312 = scalar_select %p309, %s310, %s311
      %p315 = pneg %p309
      %p316 = scmp.eq.s32.totalorder %s22, 1
      %p317 = por %p315, %p316
      %p318 = scmp.ne.s32.totalorder %s310, %s313
      %p319 = scmp.eq.s32.totalorder %s22, 0
      %p320 = por %p318, %p319
      %p321 = scmp.ne.s32.totalorder %s310, %s313
      %p322 = scmp.eq.s32.totalorder %s27, 1
      %p323 = por %p321, %p322
      %p324 = scmp.ne.s32.totalorder %s313, %s314
      %p325 = scmp.eq.s32.totalorder %s27, 0
      %p326 = por %p324, %p325
      %p327 = scmp.ne.s32.totalorder %s313, %s314
      %p328 = scmp.eq.s32.totalorder %s28, 1
      %p329 = por %p327, %p328
      %p331 = scmp.ne.s32.totalorder %s314, %s330
      %p332 = scmp.eq.s32.totalorder %s28, 0
      %p333 = por %p331, %p332
      %p334 = scmp.le.s32.totalorder 1, %s22
      %p335 = scmp.lt.s32.totalorder %s22, 3
      %p336 = pnand %p334, %p335
      %p337 = pneg %p336
      // Predicated region
      $region9: #{tpu_custom_call.1} parent=5 // pred_check
        _
      $region10: #{tpu_custom_call.1} parent=5 // pred_check_branch
        %339 = sbr.rel (%p336) target = $region12
      $region11: #{tpu_custom_call.1} parent=5 // pred_region
        %s340 = ssub.s32 %s22, 1
        // Predicated region
        $region13: #{tpu_custom_call.1} parent=11 // pred_check
          %p341 = pneg %p69
        $region14: #{tpu_custom_call.1} parent=11 // pred_check_branch
          %343 = sbr.rel (%p341) target = $region16
        $region15: #{tpu_custom_call.1} parent=11 // pred_region
          _
        $region16: #{tpu_custom_call.1} parent=11 // pred_fallthru
          _
        // Predicated region
        $region17: #{tpu_custom_call.1} parent=11 // pred_check
          %p344 = pneg %p90
        $region18: #{tpu_custom_call.1} parent=11 // pred_check_branch
          %346 = sbr.rel (%p344) target = $region20
        $region19: #{tpu_custom_call.1} parent=11 // pred_region
          _
        $region20: #{tpu_custom_call.1} parent=11 // pred_fallthru
          _
        // Predicated region
        $region21: #{tpu_custom_call.1} parent=11 // pred_check
          %p347 = pneg %p111
        $region22: #{tpu_custom_call.1} parent=11 // pred_check_branch
          %349 = sbr.rel (%p347) target = $region24
        $region23: #{tpu_custom_call.1} parent=11 // pred_region
          _
        $region24: #{tpu_custom_call.1} parent=11 // pred_fallthru
          _
        // Predicated region
        $region25: #{tpu_custom_call.1} parent=11 // pred_check
          %p350 = pneg %p132
        $region26: #{tpu_custom_call.1} parent=11 // pred_check_branch
          %352 = sbr.rel (%p350) target = $region28
        $region27: #{tpu_custom_call.1} parent=11 // pred_region
          _
        $region28: #{tpu_custom_call.1} parent=11 // pred_fallthru
          _
        // Predicated region
        $region29: #{tpu_custom_call.1} parent=11 // pred_check
          %p353 = pneg %p153
        $region30: #{tpu_custom_call.1} parent=11 // pred_check_branch
          %355 = sbr.rel (%p353) target = $region32
        $region31: #{tpu_custom_call.1} parent=11 // pred_region
          _
        $region32: #{tpu_custom_call.1} parent=11 // pred_fallthru
          _
        // Predicated region
        $region33: #{tpu_custom_call.1} parent=11 // pred_check
          %p356 = pneg %p174
        $region34: #{tpu_custom_call.1} parent=11 // pred_check_branch
          %358 = sbr.rel (%p356) target = $region36
        $region35: #{tpu_custom_call.1} parent=11 // pred_region
          _
        $region36: #{tpu_custom_call.1} parent=11 // pred_fallthru
          _
        // Predicated region
        $region37: #{tpu_custom_call.1} parent=11 // pred_check
          %p359 = pneg %p195
        $region38: #{tpu_custom_call.1} parent=11 // pred_check_branch
          %361 = sbr.rel (%p359) target = $region40
        $region39: #{tpu_custom_call.1} parent=11 // pred_region
          _
        $region40: #{tpu_custom_call.1} parent=11 // pred_fallthru
          _
        // Predicated region
        $region41: #{tpu_custom_call.1} parent=11 // pred_check
          %p362 = pneg %p216
        $region42: #{tpu_custom_call.1} parent=11 // pred_check_branch
          %364 = sbr.rel (%p362) target = $region44
        $region43: #{tpu_custom_call.1} parent=11 // pred_region
          _
        $region44: #{tpu_custom_call.1} parent=11 // pred_fallthru
          _
        // Predicated region
        $region45: #{tpu_custom_call.1} parent=11 // pred_check
          %p365 = pneg %p237
        $region46: #{tpu_custom_call.1} parent=11 // pred_check_branch
          %367 = sbr.rel (%p365) target = $region48
        $region47: #{tpu_custom_call.1} parent=11 // pred_region
          _
        $region48: #{tpu_custom_call.1} parent=11 // pred_fallthru
          _
        // Predicated region
        $region49: #{tpu_custom_call.1} parent=11 // pred_check
          %p368 = pneg %p258
        $region50: #{tpu_custom_call.1} parent=11 // pred_check_branch
          %370 = sbr.rel (%p368) target = $region52
        $region51: #{tpu_custom_call.1} parent=11 // pred_region
          _
        $region52: #{tpu_custom_call.1} parent=11 // pred_fallthru
          _
        // Predicated region
        $region53: #{tpu_custom_call.1} parent=11 // pred_check
          %p371 = pneg %p279
        $region54: #{tpu_custom_call.1} parent=11 // pred_check_branch
          %373 = sbr.rel (%p371) target = $region56
        $region55: #{tpu_custom_call.1} parent=11 // pred_region
          _
        $region56: #{tpu_custom_call.1} parent=11 // pred_fallthru
          _
        // Predicated region
        $region57: #{tpu_custom_call.1} parent=11 // pred_check
          %p374 = pneg %p300
        $region58: #{tpu_custom_call.1} parent=11 // pred_check_branch
          %376 = sbr.rel (%p374) target = $region60
        $region59: #{tpu_custom_call.1} parent=11 // pred_region
          _
        $region60: #{tpu_custom_call.1} parent=11 // pred_fallthru
          _
      $region12: #{tpu_custom_call.1} parent=5 // pred_fallthru
        _
      %p377 = scmp.lt.s32.totalorder %s22, 2
      // Predicated region
      $region61: #{tpu_custom_call.1} parent=5 // pred_check
        %p378 = pneg %p377
      $region62: #{tpu_custom_call.1} parent=5 // pred_check_branch
        %380 = sbr.rel (%p378) target = $region64
      $region63: #{tpu_custom_call.1} parent=5 // pred_region
        // Predicated region
        $region65: #{tpu_custom_call.1} parent=63 // pred_check
          %p381 = pneg %p42
        $region66: #{tpu_custom_call.1} parent=63 // pred_check_branch
          %383 = sbr.rel (%p381) target = $region68
        $region67: #{tpu_custom_call.1} parent=63 // pred_region
          %p384 = scmp.lt.s32.totalorder %s22, 1
          %s385 = scalar_select %p384, %s22, 1
          %s386 = smul.addr %s385, 8
          %s387 = scalar_lea.vmem %s0, %s386
        $region68: #{tpu_custom_call.1} parent=63 // pred_fallthru
          _
      $region64: #{tpu_custom_call.1} parent=5 // pred_fallthru
        _
      %p388 = scmp.le.s32.totalorder 1, %s22
      %p389 = scmp.lt.s32.totalorder %s22, 3
      %p390 = pnand %p388, %p389
      %p391 = pneg %p390
      // Predicated region
      $region69: #{tpu_custom_call.1} parent=5 // pred_check
        _
      $region70: #{tpu_custom_call.1} parent=5 // pred_check_branch
        %393 = sbr.rel (%p390) target = $region72
      $region71: #{tpu_custom_call.1} parent=5 // pred_region
        %s394 = ssub.s32 %s22, 1
        %p395 = scmp.lt.s32.totalorder %s27, 1
        %s396 = scalar_select %p395, %s27, 1
        %s397 = smul.addr %s396, 8
        %s398 = scalar_lea.vmem %s0, %s397
        %p399 = pneg %p48
        %p400 = pneg %p45
        %p401 = pneg %p69
        %p402 = pneg %p66
        %p403 = pneg %p90
        %p404 = pneg %p87
        %p405 = pneg %p111
        %p406 = pneg %p108
        %p407 = pneg %p132
        %p408 = pneg %p129
        %p409 = pneg %p153
        %p410 = pneg %p150
        %p411 = pneg %p174
        %p412 = pneg %p171
        %p413 = pneg %p195
        %p414 = pneg %p192
        %p415 = pneg %p216
        %p416 = pneg %p213
        %p417 = pneg %p237
        %p418 = pneg %p234
        %p419 = pneg %p258
        %p420 = pneg %p255
        %p421 = pneg %p279
        %p422 = pneg %p276
        %p423 = pneg %p300
        %p424 = pneg %p297
        %p425 = pneg %p326
        %p426 = pneg %p323
        %s427 = sand.u32 %s313, 1
        %s428 = scalar_lea.sflag [#allocation4], %s427
        %s429 = sand.u32 %s313, 1
        %s430 = smul.addr %s429, 8
        %s431 = scalar_lea.vmem [#allocation3], %s430
        %p432 = scmp.lt.s32.totalorder %s27, 1
        %s433 = scalar_select %p432, %s27, 1
        %s434 = smul.addr %s433, 8
        %s435 = scalar_lea.vmem %s0, %s434
        %v437 = vld [vmem:[%s435] sm:$0xff]
        %v438 = vlaneseq
        %v439 = vshrl.u32 %v438, 7
        %v440 = vlaneseq
        %v441 = vand.u32 %v440, 127
        %vm442 = vcmp.ge.s32.totalorder %v439, %v441
        %v443 = vld [vmem:[%s1] sm:$0x1]
        %v444 = vld [vmem:[%s2] sm:$0x1]
        %vm445 = vcmask 261120
        %v446 = vsel %vm445, %v437, 0.0
        %447 = vadd.xlane.f32.xlu0 %v446
        %v448 = vpop.xlane.xlu0 %447
        %v449 = vrcp.pop 32.0
        %v450 = vmul.f32 %v448, %v449
        %v451 = vsub.f32 %v437, %v450
        %v452 = vmul.f32 %v451, %v451
        %v453 = vsel %vm445, %v452, 0.0
        %454 = vadd.xlane.f32.xlu0 %v453
        %v455 = vpop.xlane.xlu0 %454
        %v456 = vmul.f32 %v455, %v449
        %v457 = vadd.f32 %v456, 1e-05
        %v458 = vrsqrt.pop %v457
        %v459 = vmul.f32 %v451, %v458
        %v461 = vlaneseq
        %v462 = vshrl.u32 %v461, 7
        %v463 = vsub.s32 0, %v462
        %v464 = vrot.slane %v443, %v463
        %v466 = vmul.f32 %v459, %v464
        %v468 = vlaneseq
        %v469 = vshrl.u32 %v468, 7
        %v470 = vsub.s32 0, %v469
        %v471 = vrot.slane %v444, %v470
        %v473 = vadd.f32 %v466, %v471
        %v474 = vpack.c.bf16 %v473, %v473
        %v475 = vld [vmem:[%s3] sm:$0xf]
        %v476 = vld [vmem:[%s3 + $0x4] sm:$0xf]
        %v477 = vld [vmem:[%s3 + $0x8] sm:$0xf]
        %v478 = vld [vmem:[%s3 + $0xc] sm:$0xf]
        %v479 = vld [vmem:[%s4] sm:$0x1]
        %v481 = vlaneseq
        %v482 = vshrl.u32 %v481, 7
        %v483 = vsub.s32 0, %v482
        %v484 = vrot.slane %v479, %v483
        %v490 = vunpack.c.l.b16 %v475
        %v491 = vunpack.c.l.b16 %v476
        %v492 = vunpack.c.l.b16 %v477
        %v493 = vunpack.c.l.b16 %v478
        %v494 = vpack.c.b16 %v491, %v490
        %v495 = vpack.c.b16 %v493, %v492
        %v499 = vsel %vm445, %v474, 0
        %501 = vmatprep.subr.bf16.mxu0 0
        %502 = vmatpush1.bf16.msra.mxu0 0
        %503 = vmatprep.subr.bf16.mxu0 0
        %504 = vmatpush1.bf16.msra.mxu0 0
        %505 = vmatprep.subr.bf16.mxu0 0
        %506 = vmatpush1.bf16.msra.mxu0 0
        %507 = vmatprep.subr.bf16.mxu0 0
        %508 = vmatpush1.bf16.msra.mxu0 0
        %509 = vmatprep.subr.bf16.mxu0 0
        %510 = vmatpush1.bf16.msra.mxu0 0
        %511 = vmatprep.subr.bf16.mxu0 0
        %512 = vmatpush1.bf16.msra.mxu0 0
        %513 = vmatprep.subr.bf16.mxu0 0
        %514 = vmatpush1.bf16.msra.mxu0 %v495
        %515 = vmatprep.subr.bf16.mxu0 0
        %516 = vmatpush1.bf16.msra.mxu0 %v494
        %517 = vmatprep.subr.bf16.mxu0 0
        %518 = vmatpush2.bf16.msra.mxu0 0
        %519 = vmatprep.subr.bf16.mxu0 0
        %520 = vmatpush2.bf16.msra.mxu0 0
        %521 = vmatprep.subr.bf16.mxu0 0
        %522 = vmatpush2.bf16.msra.mxu0 0
        %523 = vmatprep.subr.bf16.mxu0 0
        %524 = vmatpush2.bf16.msra.mxu0 0
        %525 = vmatprep.subr.bf16.mxu0 0
        %526 = vmatpush2.bf16.msra.mxu0 0
        %527 = vmatprep.subr.bf16.mxu0 0
        %528 = vmatpush2.bf16.msra.mxu0 0
        %529 = vmatprep.subr.bf16.mxu0 0
        %530 = vmatpush2.bf16.msra.mxu0 0
        %531 = vmatprep.subr.bf16.mxu0 0
        %532 = vmatpush2.bf16.msra.mxu0 0
        %533 = vmatprep.mubr.bf16.mxu0 0
        %534 = vmatmul.mubr.bf16.gmra.mxu0 %v499
        %v535 = vpop.f32.mrf.mxu0
        %v536 = vadd.f32 %v484, %v535
        %v537 = vpop.f32.mrf.mxu0
        %v538 = vpop.f32.mrf.mxu0
        %v539 = vpop.f32.mrf.mxu0
        %540 = vdwg.mxu0
        %v541 = vmul.f32 %v536, 0.35355338
        %543 = vrot.lane.b32.xlu0 %v541, 120
        %v544 = vpop.permute.xlu0 %543
        %546 = vrot.lane.b32.xlu0 %v541, 112
        %v547 = vpop.permute.xlu0 %546
        %549 = vrot.lane.b32.xlu0 %v541, 104
        %v550 = vpop.permute.xlu0 %549
        %v552 = vpack.c.bf16 %v541, %v541
        %v553 = vpack.c.bf16 %v544, %v544
        %v554 = vpack.c.bf16 %v547, %v547
        %v555 = vpack.c.bf16 %v550, %v550
        %557 = vrot.lane.b32.xlu0 %v536, 120
        %v558 = vpop.permute.xlu0 %557
        %560 = vrot.lane.b32.xlu0 %v536, 112
        %v561 = vpop.permute.xlu0 %560
        %563 = vrot.lane.b32.xlu0 %v536, 104
        %v564 = vpop.permute.xlu0 %563
        %v566 = vpack.c.bf16 %v536, %v536
        %v567 = vpack.c.bf16 %v558, %v558
        %v568 = vpack.c.bf16 %v561, %v561
        %v569 = vpack.c.bf16 %v564, %v564
        %571 = vrot.lane.b32.xlu0 %v566, 96
        %v572 = vpop.permute.xlu0 %571
        %vm573 = vcmask 64512
        %v575 = vsel %vm573, %v552, 0
        %v578 = vsel %vm573, %v572, 0
        %580 = vmatprep.subr.bf16.mxu0 0
        %581 = vmatpush1.bf16.xpose.msra.mxu0 0
        %582 = vmatprep.subr.bf16.mxu0 0
        %583 = vmatpush1.bf16.xpose.msra.mxu0 0
        %584 = vmatprep.subr.bf16.mxu0 0
        %585 = vmatpush1.bf16.xpose.msra.mxu0 0
        %586 = vmatprep.subr.bf16.mxu0 0
        %587 = vmatpush1.bf16.xpose.msra.mxu0 0
        %588 = vmatprep.subr.bf16.mxu0 0
        %589 = vmatpush1.bf16.xpose.msra.mxu0 0
        %590 = vmatprep.subr.bf16.mxu0 0
        %591 = vmatpush1.bf16.xpose.msra.mxu0 0
        %592 = vmatprep.subr.bf16.mxu0 0
        %593 = vmatpush1.bf16.xpose.msra.mxu0 0
        %594 = vmatprep.subr.bf16.mxu0 0
        %595 = vmatpush1.bf16.xpose.msra.mxu0 %v578
        %596 = vmatprep.subr.bf16.mxu0 0
        %597 = vmatpush2.bf16.xpose.msra.mxu0 0
        %598 = vmatprep.subr.bf16.mxu0 0
        %599 = vmatpush2.bf16.xpose.msra.mxu0 0
        %600 = vmatprep.subr.bf16.mxu0 0
        %601 = vmatpush2.bf16.xpose.msra.mxu0 0
        %602 = vmatprep.subr.bf16.mxu0 0
        %603 = vmatpush2.bf16.xpose.msra.mxu0 0
        %604 = vmatprep.subr.bf16.mxu0 0
        %605 = vmatpush2.bf16.xpose.msra.mxu0 0
        %606 = vmatprep.subr.bf16.mxu0 0
        %607 = vmatpush2.bf16.xpose.msra.mxu0 0
        %608 = vmatprep.subr.bf16.mxu0 0
        %609 = vmatpush2.bf16.xpose.msra.mxu0 0
        %610 = vmatprep.subr.bf16.mxu0 0
        %611 = vmatpush2.bf16.xpose.msra.mxu0 0
        %612 = vmatprep.mubr.bf16.mxu0 0
        %613 = vmatmul.mubr.bf16.gmra.mxu0 %v575
        %v614 = vpop.f32.mrf.mxu0
        %v615 = vadd.f32 0.0, %v614
        %v616 = vpop.f32.mrf.mxu0
        %v617 = vpop.f32.mrf.mxu0
        %v618 = vpop.f32.mrf.mxu0
        %619 = vdwg.mxu0
        %621 = vrot.lane.b32.xlu0 %v567, 96
        %v622 = vpop.permute.xlu0 %621
        %v624 = vsel %vm573, %v553, 0
        %v627 = vsel %vm573, %v622, 0
        %629 = vmatprep.subr.bf16.mxu0 0
        %630 = vmatpush1.bf16.xpose.msra.mxu0 0
        %631 = vmatprep.subr.bf16.mxu0 0
        %632 = vmatpush1.bf16.xpose.msra.mxu0 0
        %633 = vmatprep.subr.bf16.mxu0 0
        %634 = vmatpush1.bf16.xpose.msra.mxu0 0
        %635 = vmatprep.subr.bf16.mxu0 0
        %636 = vmatpush1.bf16.xpose.msra.mxu0 0
        %637 = vmatprep.subr.bf16.mxu0 0
        %638 = vmatpush1.bf16.xpose.msra.mxu0 0
        %639 = vmatprep.subr.bf16.mxu0 0
        %640 = vmatpush1.bf16.xpose.msra.mxu0 0
        %641 = vmatprep.subr.bf16.mxu0 0
        %642 = vmatpush1.bf16.xpose.msra.mxu0 0
        %643 = vmatprep.subr.bf16.mxu0 0
        %644 = vmatpush1.bf16.xpose.msra.mxu0 %v627
        %645 = vmatprep.subr.bf16.mxu0 0
        %646 = vmatpush2.bf16.xpose.msra.mxu0 0
        %647 = vmatprep.subr.bf16.mxu0 0
        %648 = vmatpush2.bf16.xpose.msra.mxu0 0
        %649 = vmatprep.subr.bf16.mxu0 0
        %650 = vmatpush2.bf16.xpose.msra.mxu0 0
        %651 = vmatprep.subr.bf16.mxu0 0
        %652 = vmatpush2.bf16.xpose.msra.mxu0 0
        %653 = vmatprep.subr.bf16.mxu0 0
        %654 = vmatpush2.bf16.xpose.msra.mxu0 0
        %655 = vmatprep.subr.bf16.mxu0 0
        %656 = vmatpush2.bf16.xpose.msra.mxu0 0
        %657 = vmatprep.subr.bf16.mxu0 0
        %658 = vmatpush2.bf16.xpose.msra.mxu0 0
        %659 = vmatprep.subr.bf16.mxu0 0
        %660 = vmatpush2.bf16.xpose.msra.mxu0 0
        %661 = vmatprep.mubr.bf16.mxu0 0
        %662 = vmatmul.mubr.bf16.gmra.mxu0 %v624
        %v663 = vpop.f32.mrf.mxu0
        %v664 = vadd.f32 0.0, %v663
        %v665 = vpop.f32.mrf.mxu0
        %v666 = vpop.f32.mrf.mxu0
        %v667 = vpop.f32.mrf.mxu0
        %668 = vdwg.mxu0
        %670 = vrot.lane.b32.xlu0 %v568, 96
        %v671 = vpop.permute.xlu0 %670
        %v673 = vsel %vm573, %v554, 0
        %v676 = vsel %vm573, %v671, 0
        %678 = vmatprep.subr.bf16.mxu0 0
        %679 = vmatpush1.bf16.xpose.msra.mxu0 0
        %680 = vmatprep.subr.bf16.mxu0 0
        %681 = vmatpush1.bf16.xpose.msra.mxu0 0
        %682 = vmatprep.subr.bf16.mxu0 0
        %683 = vmatpush1.bf16.xpose.msra.mxu0 0
        %684 = vmatprep.subr.bf16.mxu0 0
        %685 = vmatpush1.bf16.xpose.msra.mxu0 0
        %686 = vmatprep.subr.bf16.mxu0 0
        %687 = vmatpush1.bf16.xpose.msra.mxu0 0
        %688 = vmatprep.subr.bf16.mxu0 0
        %689 = vmatpush1.bf16.xpose.msra.mxu0 0
        %690 = vmatprep.subr.bf16.mxu0 0
        %691 = vmatpush1.bf16.xpose.msra.mxu0 0
        %692 = vmatprep.subr.bf16.mxu0 0
        %693 = vmatpush1.bf16.xpose.msra.mxu0 %v676
        %694 = vmatprep.subr.bf16.mxu0 0
        %695 = vmatpush2.bf16.xpose.msra.mxu0 0
        %696 = vmatprep.subr.bf16.mxu0 0
        %697 = vmatpush2.bf16.xpose.msra.mxu0 0
        %698 = vmatprep.subr.bf16.mxu0 0
        %699 = vmatpush2.bf16.xpose.msra.mxu0 0
        %700 = vmatprep.subr.bf16.mxu0 0
        %701 = vmatpush2.bf16.xpose.msra.mxu0 0
        %702 = vmatprep.subr.bf16.mxu0 0
        %703 = vmatpush2.bf16.xpose.msra.mxu0 0
        %704 = vmatprep.subr.bf16.mxu0 0
        %705 = vmatpush2.bf16.xpose.msra.mxu0 0
        %706 = vmatprep.subr.bf16.mxu0 0
        %707 = vmatpush2.bf16.xpose.msra.mxu0 0
        %708 = vmatprep.subr.bf16.mxu0 0
        %709 = vmatpush2.bf16.xpose.msra.mxu0 0
        %710 = vmatprep.mubr.bf16.mxu0 0
        %711 = vmatmul.mubr.bf16.gmra.mxu0 %v673
        %v712 = vpop.f32.mrf.mxu0
        %v713 = vadd.f32 0.0, %v712
        %v714 = vpop.f32.mrf.mxu0
        %v715 = vpop.f32.mrf.mxu0
        %v716 = vpop.f32.mrf.mxu0
        %717 = vdwg.mxu0
        %719 = vrot.lane.b32.xlu0 %v569, 96
        %v720 = vpop.permute.xlu0 %719
        %v722 = vsel %vm573, %v555, 0
        %v725 = vsel %vm573, %v720, 0
        %727 = vmatprep.subr.bf16.mxu0 0
        %728 = vmatpush1.bf16.xpose.msra.mxu0 0
        %729 = vmatprep.subr.bf16.mxu0 0
        %730 = vmatpush1.bf16.xpose.msra.mxu0 0
        %731 = vmatprep.subr.bf16.mxu0 0
        %732 = vmatpush1.bf16.xpose.msra.mxu0 0
        %733 = vmatprep.subr.bf16.mxu0 0
        %734 = vmatpush1.bf16.xpose.msra.mxu0 0
        %735 = vmatprep.subr.bf16.mxu0 0
        %736 = vmatpush1.bf16.xpose.msra.mxu0 0
        %737 = vmatprep.subr.bf16.mxu0 0
        %738 = vmatpush1.bf16.xpose.msra.mxu0 0
        %739 = vmatprep.subr.bf16.mxu0 0
        %740 = vmatpush1.bf16.xpose.msra.mxu0 0
        %741 = vmatprep.subr.bf16.mxu0 0
        %742 = vmatpush1.bf16.xpose.msra.mxu0 %v725
        %743 = vmatprep.subr.bf16.mxu0 0
        %744 = vmatpush2.bf16.xpose.msra.mxu0 0
        %745 = vmatprep.subr.bf16.mxu0 0
        %746 = vmatpush2.bf16.xpose.msra.mxu0 0
        %747 = vmatprep.subr.bf16.mxu0 0
        %748 = vmatpush2.bf16.xpose.msra.mxu0 0
        %749 = vmatprep.subr.bf16.mxu0 0
        %750 = vmatpush2.bf16.xpose.msra.mxu0 0
        %751 = vmatprep.subr.bf16.mxu0 0
        %752 = vmatpush2.bf16.xpose.msra.mxu0 0
        %753 = vmatprep.subr.bf16.mxu0 0
        %754 = vmatpush2.bf16.xpose.msra.mxu0 0
        %755 = vmatprep.subr.bf16.mxu0 0
        %756 = vmatpush2.bf16.xpose.msra.mxu0 0
        %757 = vmatprep.subr.bf16.mxu0 0
        %758 = vmatpush2.bf16.xpose.msra.mxu0 0
        %759 = vmatprep.mubr.bf16.mxu0 0
        %760 = vmatmul.mubr.bf16.gmra.mxu0 %v722
        %v761 = vpop.f32.mrf.mxu0
        %v762 = vadd.f32 0.0, %v761
        %v763 = vpop.f32.mrf.mxu0
        %v764 = vpop.f32.mrf.mxu0
        %v765 = vpop.f32.mrf.mxu0
        %766 = vdwg.mxu0
        %v767 = vsel %vm442, 1, 0
        %vm768 = vcmp.eq.s32.totalorder %v767, 1
        %v769 = vsel %vm768, %v615, -1e+30
        %v770 = vsel %vm768, %v664, -1e+30
        %v771 = vsel %vm768, %v713, -1e+30
        %v772 = vsel %vm768, %v762, -1e+30
        %v773 = vsel %vm573, %v769, -inf
        %774 = vmax.xlane.f32.xlu0 %v773
        %v775 = vpop.xlane.xlu0 %774
        %v776 = vsel %vm573, %v770, -inf
        %777 = vmax.xlane.f32.xlu0 %v776
        %v778 = vpop.xlane.xlu0 %777
        %v779 = vsel %vm573, %v771, -inf
        %780 = vmax.xlane.f32.xlu0 %v779
        %v781 = vpop.xlane.xlu0 %780
        %v782 = vsel %vm573, %v772, -inf
        %783 = vmax.xlane.f32.xlu0 %v782
        %v784 = vpop.xlane.xlu0 %783
        %v785 = vsub.f32 %v769, %v775
        %v786 = vsub.f32 %v770, %v778
        %v787 = vsub.f32 %v771, %v781
        %v788 = vsub.f32 %v772, %v784
        %v789 = vmul.f32 %v785, 1.442695
        %v790 = vpow.pop %v789
        %v791 = vmul.f32 %v786, 1.442695
        %v792 = vpow.pop %v791
        %v793 = vmul.f32 %v787, 1.442695
        %v794 = vpow.pop %v793
        %v795 = vmul.f32 %v788, 1.442695
        %v796 = vpow.pop %v795
        %v797 = vsel %vm573, %v790, 0.0
        %798 = vadd.xlane.f32.xlu0 %v797
        %v799 = vpop.xlane.xlu0 %798
        %v800 = vsel %vm573, %v792, 0.0
        %801 = vadd.xlane.f32.xlu0 %v800
        %v802 = vpop.xlane.xlu0 %801
        %v803 = vsel %vm573, %v794, 0.0
        %804 = vadd.xlane.f32.xlu0 %v803
        %v805 = vpop.xlane.xlu0 %804
        %v806 = vsel %vm573, %v796, 0.0
        %807 = vadd.xlane.f32.xlu0 %v806
        %v808 = vpop.xlane.xlu0 %807
        %v809 = vrcp.pop %v799
        %v810 = vrcp.pop %v802
        %v811 = vrcp.pop %v805
        %v812 = vrcp.pop %v808
        %v813 = vmul.f32 %v790, %v809
        %v814 = vmul.f32 %v792, %v810
        %v815 = vmul.f32 %v794, %v811
        %v816 = vmul.f32 %v796, %v812
        %v817 = vpack.c.bf16 %v813, %v813
        %v818 = vpack.c.bf16 %v814, %v814
        %v819 = vpack.c.bf16 %v815, %v815
        %v820 = vpack.c.bf16 %v816, %v816
        %821 = vrot.lane.b32.xlu0 %v566, 64
        %v822 = vpop.permute.xlu0 %821
        %v824 = vsel %vm573, %v817, 0
        %vm826 = vcmask 1043456
        %v828 = vsel %vm826, %v822, 0
        %830 = vmatprep.subr.bf16.mxu0 0
        %831 = vmatpush1.bf16.msra.mxu0 0
        %832 = vmatprep.subr.bf16.mxu0 0
        %833 = vmatpush1.bf16.msra.mxu0 0
        %834 = vmatprep.subr.bf16.mxu0 0
        %835 = vmatpush1.bf16.msra.mxu0 0
        %836 = vmatprep.subr.bf16.mxu0 0
        %837 = vmatpush1.bf16.msra.mxu0 0
        %838 = vmatprep.subr.bf16.mxu0 0
        %839 = vmatpush1.bf16.msra.mxu0 0
        %840 = vmatprep.subr.bf16.mxu0 0
        %841 = vmatpush1.bf16.msra.mxu0 0
        %842 = vmatprep.subr.bf16.mxu0 0
        %843 = vmatpush1.bf16.msra.mxu0 0
        %844 = vmatprep.subr.bf16.mxu0 0
        %845 = vmatpush1.bf16.msra.mxu0 %v828
        %846 = vmatprep.subr.bf16.mxu0 0
        %847 = vmatpush2.bf16.msra.mxu0 0
        %848 = vmatprep.subr.bf16.mxu0 0
        %849 = vmatpush2.bf16.msra.mxu0 0
        %850 = vmatprep.subr.bf16.mxu0 0
        %851 = vmatpush2.bf16.msra.mxu0 0
        %852 = vmatprep.subr.bf16.mxu0 0
        %853 = vmatpush2.bf16.msra.mxu0 0
        %854 = vmatprep.subr.bf16.mxu0 0
        %855 = vmatpush2.bf16.msra.mxu0 0
        %856 = vmatprep.subr.bf16.mxu0 0
        %857 = vmatpush2.bf16.msra.mxu0 0
        %858 = vmatprep.subr.bf16.mxu0 0
        %859 = vmatpush2.bf16.msra.mxu0 0
        %860 = vmatprep.subr.bf16.mxu0 0
        %861 = vmatpush2.bf16.msra.mxu0 0
        %862 = vmatprep.mubr.bf16.mxu0 0
        %863 = vmatmul.mubr.bf16.gmra.mxu0 %v824
        %v864 = vpop.f32.mrf.mxu0
        %v865 = vadd.f32 0.0, %v864
        %v866 = vpop.f32.mrf.mxu0
        %v867 = vpop.f32.mrf.mxu0
        %v868 = vpop.f32.mrf.mxu0
        %869 = vdwg.mxu0
        %870 = vrot.lane.b32.xlu0 %v567, 64
        %v871 = vpop.permute.xlu0 %870
        %v873 = vsel %vm573, %v818, 0
        %v876 = vsel %vm826, %v871, 0
        %878 = vmatprep.subr.bf16.mxu0 0
        %879 = vmatpush1.bf16.msra.mxu0 0
        %880 = vmatprep.subr.bf16.mxu0 0
        %881 = vmatpush1.bf16.msra.mxu0 0
        %882 = vmatprep.subr.bf16.mxu0 0
        %883 = vmatpush1.bf16.msra.mxu0 0
        %884 = vmatprep.subr.bf16.mxu0 0
        %885 = vmatpush1.bf16.msra.mxu0 0
        %886 = vmatprep.subr.bf16.mxu0 0
        %887 = vmatpush1.bf16.msra.mxu0 0
        %888 = vmatprep.subr.bf16.mxu0 0
        %889 = vmatpush1.bf16.msra.mxu0 0
        %890 = vmatprep.subr.bf16.mxu0 0
        %891 = vmatpush1.bf16.msra.mxu0 0
        %892 = vmatprep.subr.bf16.mxu0 0
        %893 = vmatpush1.bf16.msra.mxu0 %v876
        %894 = vmatprep.subr.bf16.mxu0 0
        %895 = vmatpush2.bf16.msra.mxu0 0
        %896 = vmatprep.subr.bf16.mxu0 0
        %897 = vmatpush2.bf16.msra.mxu0 0
        %898 = vmatprep.subr.bf16.mxu0 0
        %899 = vmatpush2.bf16.msra.mxu0 0
        %900 = vmatprep.subr.bf16.mxu0 0
        %901 = vmatpush2.bf16.msra.mxu0 0
        %902 = vmatprep.subr.bf16.mxu0 0
        %903 = vmatpush2.bf16.msra.mxu0 0
        %904 = vmatprep.subr.bf16.mxu0 0
        %905 = vmatpush2.bf16.msra.mxu0 0
        %906 = vmatprep.subr.bf16.mxu0 0
        %907 = vmatpush2.bf16.msra.mxu0 0
        %908 = vmatprep.subr.bf16.mxu0 0
        %909 = vmatpush2.bf16.msra.mxu0 0
        %910 = vmatprep.mubr.bf16.mxu0 0
        %911 = vmatmul.mubr.bf16.gmra.mxu0 %v873
        %v912 = vpop.f32.mrf.mxu0
        %v913 = vadd.f32 0.0, %v912
        %v914 = vpop.f32.mrf.mxu0
        %v915 = vpop.f32.mrf.mxu0
        %v916 = vpop.f32.mrf.mxu0
        %917 = vdwg.mxu0
        %918 = vrot.lane.b32.xlu0 %v568, 64
        %v919 = vpop.permute.xlu0 %918
        %v921 = vsel %vm573, %v819, 0
        %v924 = vsel %vm826, %v919, 0
        %926 = vmatprep.subr.bf16.mxu0 0
        %927 = vmatpush1.bf16.msra.mxu0 0
        %928 = vmatprep.subr.bf16.mxu0 0
        %929 = vmatpush1.bf16.msra.mxu0 0
        %930 = vmatprep.subr.bf16.mxu0 0
        %931 = vmatpush1.bf16.msra.mxu0 0
        %932 = vmatprep.subr.bf16.mxu0 0
        %933 = vmatpush1.bf16.msra.mxu0 0
        %934 = vmatprep.subr.bf16.mxu0 0
        %935 = vmatpush1.bf16.msra.mxu0 0
        %936 = vmatprep.subr.bf16.mxu0 0
        %937 = vmatpush1.bf16.msra.mxu0 0
        %938 = vmatprep.subr.bf16.mxu0 0
        %939 = vmatpush1.bf16.msra.mxu0 0
        %940 = vmatprep.subr.bf16.mxu0 0
        %941 = vmatpush1.bf16.msra.mxu0 %v924
        %942 = vmatprep.subr.bf16.mxu0 0
        %943 = vmatpush2.bf16.msra.mxu0 0
        %944 = vmatprep.subr.bf16.mxu0 0
        %945 = vmatpush2.bf16.msra.mxu0 0
        %946 = vmatprep.subr.bf16.mxu0 0
        %947 = vmatpush2.bf16.msra.mxu0 0
        %948 = vmatprep.subr.bf16.mxu0 0
        %949 = vmatpush2.bf16.msra.mxu0 0
        %950 = vmatprep.subr.bf16.mxu0 0
        %951 = vmatpush2.bf16.msra.mxu0 0
        %952 = vmatprep.subr.bf16.mxu0 0
        %953 = vmatpush2.bf16.msra.mxu0 0
        %954 = vmatprep.subr.bf16.mxu0 0
        %955 = vmatpush2.bf16.msra.mxu0 0
        %956 = vmatprep.subr.bf16.mxu0 0
        %957 = vmatpush2.bf16.msra.mxu0 0
        %958 = vmatprep.mubr.bf16.mxu0 0
        %959 = vmatmul.mubr.bf16.gmra.mxu0 %v921
        %v960 = vpop.f32.mrf.mxu0
        %v961 = vadd.f32 0.0, %v960
        %v962 = vpop.f32.mrf.mxu0
        %v963 = vpop.f32.mrf.mxu0
        %v964 = vpop.f32.mrf.mxu0
        %965 = vdwg.mxu0
        %966 = vrot.lane.b32.xlu0 %v569, 64
        %v967 = vpop.permute.xlu0 %966
        %v969 = vsel %vm573, %v820, 0
        %v972 = vsel %vm826, %v967, 0
        %974 = vmatprep.subr.bf16.mxu0 0
        %975 = vmatpush1.bf16.msra.mxu0 0
        %976 = vmatprep.subr.bf16.mxu0 0
        %977 = vmatpush1.bf16.msra.mxu0 0
        %978 = vmatprep.subr.bf16.mxu0 0
        %979 = vmatpush1.bf16.msra.mxu0 0
        %980 = vmatprep.subr.bf16.mxu0 0
        %981 = vmatpush1.bf16.msra.mxu0 0
        %982 = vmatprep.subr.bf16.mxu0 0
        %983 = vmatpush1.bf16.msra.mxu0 0
        %984 = vmatprep.subr.bf16.mxu0 0
        %985 = vmatpush1.bf16.msra.mxu0 0
        %986 = vmatprep.subr.bf16.mxu0 0
        %987 = vmatpush1.bf16.msra.mxu0 0
        %988 = vmatprep.subr.bf16.mxu0 0
        %989 = vmatpush1.bf16.msra.mxu0 %v972
        %990 = vmatprep.subr.bf16.mxu0 0
        %991 = vmatpush2.bf16.msra.mxu0 0
        %992 = vmatprep.subr.bf16.mxu0 0
        %993 = vmatpush2.bf16.msra.mxu0 0
        %994 = vmatprep.subr.bf16.mxu0 0
        %995 = vmatpush2.bf16.msra.mxu0 0
        %996 = vmatprep.subr.bf16.mxu0 0
        %997 = vmatpush2.bf16.msra.mxu0 0
        %998 = vmatprep.subr.bf16.mxu0 0
        %999 = vmatpush2.bf16.msra.mxu0 0
        %1000 = vmatprep.subr.bf16.mxu0 0
        %1001 = vmatpush2.bf16.msra.mxu0 0
        %1002 = vmatprep.subr.bf16.mxu0 0
        %1003 = vmatpush2.bf16.msra.mxu0 0
        %1004 = vmatprep.subr.bf16.mxu0 0
        %1005 = vmatpush2.bf16.msra.mxu0 0
        %1006 = vmatprep.mubr.bf16.mxu0 0
        %1007 = vmatmul.mubr.bf16.gmra.mxu0 %v969
        %v1008 = vpop.f32.mrf.mxu0
        %v1009 = vadd.f32 0.0, %v1008
        %v1010 = vpop.f32.mrf.mxu0
        %v1011 = vpop.f32.mrf.mxu0
        %v1012 = vpop.f32.mrf.mxu0
        %1013 = vdwg.mxu0
        %1014 = vst.msk [vmem:[#allocation2] sm:$0xff] %vm573, %v865
        %1016 = vrot.lane.b32.xlu0 %v913, 8
        %v1017 = vpop.permute.xlu0 %1016
        %vm1019 = vcmask 130112
        %1020 = vst.msk [vmem:[#allocation2] sm:$0xff] %vm1019, %v1017
        %1022 = vrot.lane.b32.xlu0 %v961, 16
        %v1023 = vpop.permute.xlu0 %1022
        %vm1025 = vcmask 195712
        %1026 = vst.msk [vmem:[#allocation2] sm:$0xff] %vm1025, %v1023
        %1028 = vrot.lane.b32.xlu0 %v1009, 24
        %v1029 = vpop.permute.xlu0 %1028
        %vm1031 = vcmask 261312
        %1032 = vst.msk [vmem:[#allocation2] sm:$0xff] %vm1031, %v1029
        %v1033 = vld [vmem:[#allocation2] sm:$0xff]
        %v1034 = vpack.c.bf16 %v1033, %v1033
        %v1035 = vld [vmem:[%s5] sm:$0xf]
        %v1036 = vld [vmem:[%s5 + $0x4] sm:$0xf]
        %v1037 = vld [vmem:[%s5 + $0x8] sm:$0xf]
        %v1038 = vld [vmem:[%s5 + $0xc] sm:$0xf]
        %v1039 = vld [vmem:[%s6] sm:$0x1]
        %v1041 = vlaneseq
        %v1042 = vshrl.u32 %v1041, 7
        %v1043 = vsub.s32 0, %v1042
        %v1044 = vrot.slane %v1039, %v1043
        %v1050 = vunpack.c.l.b16 %v1035
        %v1051 = vunpack.c.l.b16 %v1036
        %v1052 = vunpack.c.l.b16 %v1037
        %v1053 = vunpack.c.l.b16 %v1038
        %v1054 = vpack.c.b16 %v1051, %v1050
        %v1055 = vpack.c.b16 %v1053, %v1052
        %v1059 = vsel %vm445, %v1034, 0
        %1061 = vmatprep.subr.bf16.mxu0 0
        %1062 = vmatpush1.bf16.msra.mxu0 0
        %1063 = vmatprep.subr.bf16.mxu0 0
        %1064 = vmatpush1.bf16.msra.mxu0 0
        %1065 = vmatprep.subr.bf16.mxu0 0
        %1066 = vmatpush1.bf16.msra.mxu0 0
        %1067 = vmatprep.subr.bf16.mxu0 0
        %1068 = vmatpush1.bf16.msra.mxu0 0
        %1069 = vmatprep.subr.bf16.mxu0 0
        %1070 = vmatpush1.bf16.msra.mxu0 0
        %1071 = vmatprep.subr.bf16.mxu0 0
        %1072 = vmatpush1.bf16.msra.mxu0 0
        %1073 = vmatprep.subr.bf16.mxu0 0
        %1074 = vmatpush1.bf16.msra.mxu0 %v1055
        %1075 = vmatprep.subr.bf16.mxu0 0
        %1076 = vmatpush1.bf16.msra.mxu0 %v1054
        %1077 = vmatprep.subr.bf16.mxu0 0
        %1078 = vmatpush2.bf16.msra.mxu0 0
        %1079 = vmatprep.subr.bf16.mxu0 0
        %1080 = vmatpush2.bf16.msra.mxu0 0
        %1081 = vmatprep.subr.bf16.mxu0 0
        %1082 = vmatpush2.bf16.msra.mxu0 0
        %1083 = vmatprep.subr.bf16.mxu0 0
        %1084 = vmatpush2.bf16.msra.mxu0 0
        %1085 = vmatprep.subr.bf16.mxu0 0
        %1086 = vmatpush2.bf16.msra.mxu0 0
        %1087 = vmatprep.subr.bf16.mxu0 0
        %1088 = vmatpush2.bf16.msra.mxu0 0
        %1089 = vmatprep.subr.bf16.mxu0 0
        %1090 = vmatpush2.bf16.msra.mxu0 0
        %1091 = vmatprep.subr.bf16.mxu0 0
        %1092 = vmatpush2.bf16.msra.mxu0 0
        %1093 = vmatprep.mubr.bf16.mxu0 0
        %1094 = vmatmul.mubr.bf16.gmra.mxu0 %v1059
        %v1095 = vpop.f32.mrf.mxu0
        %v1096 = vadd.f32 %v1044, %v1095
        %v1097 = vpop.f32.mrf.mxu0
        %v1098 = vpop.f32.mrf.mxu0
        %v1099 = vpop.f32.mrf.mxu0
        %1100 = vdwg.mxu0
        %v1101 = vadd.f32 %v437, %v1096
        %v1102 = vld [vmem:[%s7] sm:$0x1]
        %v1103 = vld [vmem:[%s8] sm:$0x1]
        %v1104 = vsel %vm445, %v1101, 0.0
        %1105 = vadd.xlane.f32.xlu0 %v1104
        %v1106 = vpop.xlane.xlu0 %1105
        %v1107 = vmul.f32 %v1106, %v449
        %v1108 = vsub.f32 %v1101, %v1107
        %v1109 = vmul.f32 %v1108, %v1108
        %v1110 = vsel %vm445, %v1109, 0.0
        %1111 = vadd.xlane.f32.xlu0 %v1110
        %v1112 = vpop.xlane.xlu0 %1111
        %v1113 = vmul.f32 %v1112, %v449
        %v1114 = vadd.f32 %v1113, 1e-05
        %v1115 = vrsqrt.pop %v1114
        %v1116 = vmul.f32 %v1108, %v1115
        %v1118 = vlaneseq
        %v1119 = vshrl.u32 %v1118, 7
        %v1120 = vsub.s32 0, %v1119
        %v1121 = vrot.slane %v1102, %v1120
        %v1123 = vmul.f32 %v1116, %v1121
        %v1125 = vlaneseq
        %v1126 = vshrl.u32 %v1125, 7
        %v1127 = vsub.s32 0, %v1126
        %v1128 = vrot.slane %v1103, %v1127
        %v1130 = vadd.f32 %v1123, %v1128
        %v1131 = vpack.c.bf16 %v1130, %v1130
        %v1132 = vld [vmem:[%s9] sm:$0xf]
        %v1133 = vld [vmem:[%s9 + $0x4] sm:$0xf]
        %v1134 = vld [vmem:[%s9 + $0x8] sm:$0xf]
        %v1135 = vld [vmem:[%s9 + $0xc] sm:$0xf]
        %v1136 = vld [vmem:[%s10] sm:$0x1]
        %v1138 = vlaneseq
        %v1139 = vshrl.u32 %v1138, 7
        %v1140 = vsub.s32 0, %v1139
        %v1141 = vrot.slane %v1136, %v1140
        %v1147 = vunpack.c.l.b16 %v1132
        %v1148 = vunpack.c.l.b16 %v1133
        %v1149 = vunpack.c.l.b16 %v1134
        %v1150 = vunpack.c.l.b16 %v1135
        %v1151 = vpack.c.b16 %v1148, %v1147
        %v1152 = vpack.c.b16 %v1150, %v1149
        %v1156 = vsel %vm445, %v1131, 0
        %1158 = vmatprep.subr.bf16.mxu0 0
        %1159 = vmatpush1.bf16.msra.mxu0 0
        %1160 = vmatprep.subr.bf16.mxu0 0
        %1161 = vmatpush1.bf16.msra.mxu0 0
        %1162 = vmatprep.subr.bf16.mxu0 0
        %1163 = vmatpush1.bf16.msra.mxu0 0
        %1164 = vmatprep.subr.bf16.mxu0 0
        %1165 = vmatpush1.bf16.msra.mxu0 0
        %1166 = vmatprep.subr.bf16.mxu0 0
        %1167 = vmatpush1.bf16.msra.mxu0 0
        %1168 = vmatprep.subr.bf16.mxu0 0
        %1169 = vmatpush1.bf16.msra.mxu0 0
        %1170 = vmatprep.subr.bf16.mxu0 0
        %1171 = vmatpush1.bf16.msra.mxu0 %v1152
        %1172 = vmatprep.subr.bf16.mxu0 0
        %1173 = vmatpush1.bf16.msra.mxu0 %v1151
        %1174 = vmatprep.subr.bf16.mxu0 0
        %1175 = vmatpush2.bf16.msra.mxu0 0
        %1176 = vmatprep.subr.bf16.mxu0 0
        %1177 = vmatpush2.bf16.msra.mxu0 0
        %1178 = vmatprep.subr.bf16.mxu0 0
        %1179 = vmatpush2.bf16.msra.mxu0 0
        %1180 = vmatprep.subr.bf16.mxu0 0
        %1181 = vmatpush2.bf16.msra.mxu0 0
        %1182 = vmatprep.subr.bf16.mxu0 0
        %1183 = vmatpush2.bf16.msra.mxu0 0
        %1184 = vmatprep.subr.bf16.mxu0 0
        %1185 = vmatpush2.bf16.msra.mxu0 0
        %1186 = vmatprep.subr.bf16.mxu0 0
        %1187 = vmatpush2.bf16.msra.mxu0 0
        %1188 = vmatprep.subr.bf16.mxu0 0
        %1189 = vmatpush2.bf16.msra.mxu0 0
        %1190 = vmatprep.mubr.bf16.mxu0 0
        %1191 = vmatmul.mubr.bf16.gmra.mxu0 %v1156
        %v1192 = vpop.f32.mrf.mxu0
        %v1193 = vadd.f32 %v1141, %v1192
        %v1194 = vpop.f32.mrf.mxu0
        %v1195 = vpop.f32.mrf.mxu0
        %v1196 = vpop.f32.mrf.mxu0
        %1197 = vdwg.mxu0
        %v1198 = vmul.f32 %v1193, 0.5
        %v1199 = vmul.f32 %v1193, 0.044715
        %v1200 = vmul.f32 %v1199, %v1193
        %v1201 = vmul.f32 %v1200, %v1193
        %v1202 = vadd.f32 %v1193, %v1201
        %v1203 = vmul.f32 %v1202, 0.7978846
        %v1204 = vtanh.pop %v1203
        %v1205 = vadd.f32 %v1204, 1.0
        %v1206 = vmul.f32 %v1198, %v1205
        %v1207 = vpack.c.bf16 %v1206, %v1206
        %v1208 = vld [vmem:[%s11] sm:$0xf]
        %v1209 = vld [vmem:[%s11 + $0x4] sm:$0xf]
        %v1210 = vld [vmem:[%s11 + $0x8] sm:$0xf]
        %v1211 = vld [vmem:[%s11 + $0xc] sm:$0xf]
        %v1212 = vld [vmem:[%s11 + $0x10] sm:$0xf]
        %v1213 = vld [vmem:[%s11 + $0x14] sm:$0xf]
        %v1214 = vld [vmem:[%s11 + $0x18] sm:$0xf]
        %v1215 = vld [vmem:[%s11 + $0x1c] sm:$0xf]
        %v1216 = vld [vmem:[%s11 + $0x20] sm:$0xf]
        %v1217 = vld [vmem:[%s11 + $0x24] sm:$0xf]
        %v1218 = vld [vmem:[%s11 + $0x28] sm:$0xf]
        %v1219 = vld [vmem:[%s11 + $0x2c] sm:$0xf]
        %v1220 = vld [vmem:[%s11 + $0x30] sm:$0xf]
        %v1221 = vld [vmem:[%s11 + $0x34] sm:$0xf]
        %v1222 = vld [vmem:[%s11 + $0x38] sm:$0xf]
        %v1223 = vld [vmem:[%s11 + $0x3c] sm:$0xf]
        %v1224 = vld [vmem:[%s12] sm:$0x1]
        %v1226 = vlaneseq
        %v1227 = vshrl.u32 %v1226, 7
        %v1228 = vsub.s32 0, %v1227
        %v1229 = vrot.slane %v1224, %v1228
        %v1247 = vunpack.c.l.b16 %v1208
        %v1248 = vunpack.c.l.b16 %v1209
        %v1249 = vunpack.c.l.b16 %v1210
        %v1250 = vunpack.c.l.b16 %v1211
        %v1251 = vunpack.c.l.b16 %v1212
        %v1252 = vunpack.c.l.b16 %v1213
        %v1253 = vunpack.c.l.b16 %v1214
        %v1254 = vunpack.c.l.b16 %v1215
        %v1255 = vunpack.c.l.b16 %v1216
        %v1256 = vunpack.c.l.b16 %v1217
        %v1257 = vunpack.c.l.b16 %v1218
        %v1258 = vunpack.c.l.b16 %v1219
        %v1259 = vunpack.c.l.b16 %v1220
        %v1260 = vunpack.c.l.b16 %v1221
        %v1261 = vunpack.c.l.b16 %v1222
        %v1262 = vunpack.c.l.b16 %v1223
        %v1263 = vpack.c.b16 %v1248, %v1247
        %v1264 = vpack.c.b16 %v1250, %v1249
        %v1265 = vpack.c.b16 %v1252, %v1251
        %v1266 = vpack.c.b16 %v1254, %v1253
        %v1267 = vpack.c.b16 %v1256, %v1255
        %v1268 = vpack.c.b16 %v1258, %v1257
        %v1269 = vpack.c.b16 %v1260, %v1259
        %v1270 = vpack.c.b16 %v1262, %v1261
        %1279 = vmatprep.subr.bf16.mxu0 0
        %1280 = vmatpush1.bf16.msra.mxu0 %v1270
        %1281 = vmatprep.subr.bf16.mxu0 0
        %1282 = vmatpush1.bf16.msra.mxu0 %v1269
        %1283 = vmatprep.subr.bf16.mxu0 0
        %1284 = vmatpush1.bf16.msra.mxu0 %v1268
        %1285 = vmatprep.subr.bf16.mxu0 0
        %1286 = vmatpush1.bf16.msra.mxu0 %v1267
        %1287 = vmatprep.subr.bf16.mxu0 0
        %1288 = vmatpush1.bf16.msra.mxu0 %v1266
        %1289 = vmatprep.subr.bf16.mxu0 0
        %1290 = vmatpush1.bf16.msra.mxu0 %v1265
        %1291 = vmatprep.subr.bf16.mxu0 0
        %1292 = vmatpush1.bf16.msra.mxu0 %v1264
        %1293 = vmatprep.subr.bf16.mxu0 0
        %1294 = vmatpush1.bf16.msra.mxu0 %v1263
        %1295 = vmatprep.subr.bf16.mxu0 0
        %1296 = vmatpush2.bf16.msra.mxu0 0
        %1297 = vmatprep.subr.bf16.mxu0 0
        %1298 = vmatpush2.bf16.msra.mxu0 0
        %1299 = vmatprep.subr.bf16.mxu0 0
        %1300 = vmatpush2.bf16.msra.mxu0 0
        %1301 = vmatprep.subr.bf16.mxu0 0
        %1302 = vmatpush2.bf16.msra.mxu0 0
        %1303 = vmatprep.subr.bf16.mxu0 0
        %1304 = vmatpush2.bf16.msra.mxu0 0
        %1305 = vmatprep.subr.bf16.mxu0 0
        %1306 = vmatpush2.bf16.msra.mxu0 0
        %1307 = vmatprep.subr.bf16.mxu0 0
        %1308 = vmatpush2.bf16.msra.mxu0 0
        %1309 = vmatprep.subr.bf16.mxu0 0
        %1310 = vmatpush2.bf16.msra.mxu0 0
        %1311 = vmatprep.mubr.bf16.mxu0 0
        %1312 = vmatmul.mubr.bf16.gmra.mxu0 %v1207
        %v1313 = vpop.f32.mrf.mxu0
        %v1314 = vadd.f32 %v1229, %v1313
        %v1315 = vpop.f32.mrf.mxu0
        %v1316 = vpop.f32.mrf.mxu0
        %v1317 = vpop.f32.mrf.mxu0
        %1318 = vdwg.mxu0
        %v1319 = vadd.f32 %v1101, %v1314
        %1320 = vst.msk [vmem:[%s431] sm:$0xff] %vm445, %v1319
        %s1321 = sand.u32 %s313, 1
        %s1322 = scalar_lea.sflag [#allocation4], %s1321
        %s1323 = sand.u32 %s313, 1
        %s1324 = smul.addr %s1323, 8
        %s1325 = scalar_lea.vmem [#allocation3], %s1324
        // Predicated region
        $region73: #{tpu_custom_call.1} parent=71 // pred_check
          %p1326 = pneg %p323
        $region74: #{tpu_custom_call.1} parent=71 // pred_check_branch
          %1328 = sbr.rel (%p1326) target = $region76
        $region75: #{tpu_custom_call.1} parent=71 // pred_region
          %s1330 = ssub.s32 128, 128
          %1331 = vsyncadd %s1322, %s1330
          %s1332 = smul.addr %s27, 128
          %s1333 = scalar_lea.hbm %s13, %s1332
          %s1335 = sshll.u32 %s1325, 4
          %s1336 = int_to_ptr.vmem [resolvable:$true] %s1335
          %1338 = dma.vmem_to_hbm [thread:$0]  %s1336, 128, %s1333, %s1322
        $region76: #{tpu_custom_call.1} parent=71 // pred_fallthru
          _
      $region72: #{tpu_custom_call.1} parent=5 // pred_fallthru
        _
      %p1339 = scmp.le.s32.totalorder 2, %s22
      // Predicated region
      $region77: #{tpu_custom_call.1} parent=5 // pred_check
        %p1340 = pneg %p1339
      $region78: #{tpu_custom_call.1} parent=5 // pred_check_branch
        %1342 = sbr.rel (%p1340) target = $region80
      $region79: #{tpu_custom_call.1} parent=5 // pred_region
        %s1343 = ssub.s32 %s22, 2
        // Predicated region
        $region81: #{tpu_custom_call.1} parent=79 // pred_check
          %p1344 = pneg %p329
        $region82: #{tpu_custom_call.1} parent=79 // pred_check_branch
          %1346 = sbr.rel (%p1344) target = $region84
        $region83: #{tpu_custom_call.1} parent=79 // pred_region
          %s1347 = sand.u32 %s314, 1
          %s1348 = scalar_lea.sflag [#allocation4], %s1347
          %s1349 = sand.u32 %s314, 1
          %s1350 = smul.addr %s1349, 8
          %s1351 = scalar_lea.vmem [#allocation3], %s1350
          %1352 = dma.done %s1348, 128
        $region84: #{tpu_custom_call.1} parent=79 // pred_fallthru
          _
      $region80: #{tpu_custom_call.1} parent=5 // pred_fallthru
        _
    $region6: #{tpu_custom_call.1} parent=1 // loop_footer
      %s26 = sadd.s32 1, %s22
    $region7: #{tpu_custom_call.1} parent=1 // loop_footer_branch
      %21 = sbr.rel target = $region3
    $region8: #{tpu_custom_call.1} parent=1 // loop_exit
      _
    %1353 = vsyncpa [#allocation4], 1
    %s1354 = scalar_lea.sflag [#allocation4], 1
    %1355 = vsyncpa %s1354, 1

</llo_original>
